<compile_context>
chip_gen: v5e
topology: v5e:2x2
jax: 0.10.0
libtpu: 0.0.40
codegen_flags: <defaults>
</compile_context>

<pallas_src>
import functools

import jax
import jax.numpy as jnp
from jax.experimental import pallas as pl
from jax.experimental.pallas import tpu as pltpu

_EPS = 1e-5                     # nn.GroupNorm default eps
_INV_SQRT2 = 0.7071067811865476
_INV_1414 = 1.0 / 1.414         # residual scale as a multiply (not a divide)


def _erf(x):
    # Abramowitz & Stegun 7.1.26 (|err| < 1.5e-7); exp rides the EUP slot.
    a1, a2, a3, a4, a5 = 0.254829592, -0.284496736, 1.421413741, -1.453152027, 1.061405429
    p = 0.3275911
    sgn = jnp.where(x >= 0.0, 1.0, -1.0)
    ax = jnp.abs(x)
    t = 1.0 / (1.0 + p * ax)
    poly = ((((a5 * t + a4) * t + a3) * t + a2) * t + a1) * t
    return sgn * (1.0 - poly * jnp.exp(-ax * ax))


def _gelu(x):
    # exact (erf-based) GELU, matching torch.nn.GELU() default
    return 0.5 * x * (1.0 + _erf(x * _INV_SQRT2))


def _round_up(x, m):
    return (x + m - 1) // m * m


# ---------------------------------------------------------------------------
# Fused Pallas kernel: (conv3x3 + GN + GELU) x2 + residual, one sample per step
# ---------------------------------------------------------------------------
def _double_conv_kernel(xf_ref, m_ref,
                        w1_ref, b1_ref, g1_ref, bt1_ref,
                        w2_ref, b2_ref, g2_ref, bt2_ref,
                        o_ref, *, wpad, inv_count, same_ch, mm_dtype):
    # xf_ref : (1, Cp, Lp)  zero-padded sample, flattened row-major over (H+2, W+2)
    # m_ref  : (1, Lp)      1.0 on interior (valid) pixels, 0.0 on pad ring / tail
    # w*_ref : (Op, 9*Cp)   conv weights packed so K index = (kh*3+kw)*Cp + cin
    # b/g/bt : (Op, 1)      conv bias, GN gamma, GN beta (per out-channel)
    # o_ref  : (1, Op, Lp)
    x0 = xf_ref[0]                       # (Cp, Lp)
    m = m_ref[...]                       # (1, Lp)

    def make_taps(xflat):
        # 9 shifted views of the flat padded sample, stacked on the contraction
        # axis -> one MXU matmul with K = 9*C instead of nine K=C matmuls.
        # Roll wrap-around only contaminates pad-ring positions, which are
        # masked out of the GN statistics and discarded by the wrapper.
        pieces = []
        for kh in range(3):
            for kw in range(3):
                d = (kh - 1) * wpad + (kw - 1)
                pieces.append(xflat if d == 0 else jnp.roll(xflat, -d, axis=1))
        return jnp.concatenate(pieces, axis=0)            # (9*C, Lp)

    def conv_gn_gelu(xflat, w_ref, b_ref, g_ref, bt_ref):
        taps = make_taps(xflat)
        acc = jnp.dot(w_ref[...].astype(mm_dtype), taps.astype(mm_dtype),
                      preferred_element_type=jnp.float32)  # (Op, Lp)
        acc = acc + b_ref[...]                             # conv bias
        # GroupNorm(1, C): one sweep over the valid region (sum & sum-of-squares).
        am = acc * m
        s = jnp.sum(am)
        ss = jnp.sum(am * acc)
        mean = s * inv_count
        var = ss * inv_count - mean * mean
        scale = g_ref[...] * jax.lax.rsqrt(var + _EPS)     # gamma * inv_std  (Op, 1)
        off = bt_ref[...] - mean * scale                   # beta - mean*scale
        return _gelu(acc * scale + off)

    x1 = conv_gn_gelu(x0, w1_ref, b1_ref, g1_ref, bt1_ref) * m   # re-zero pad ring
    x2 = conv_gn_gelu(x1, w2_ref, b2_ref, g2_ref, bt2_ref)

    res = x0 if same_ch else x1          # static branch (chin == chout or not)
    o_ref[0] = ((x2 + res) * _INV_1414).astype(o_ref.dtype)


# ---------------------------------------------------------------------------
# Wrapper: layout prep (pad / flatten / weight packing) + pallas_call plumbing
# ---------------------------------------------------------------------------
def double_conv_forward(x_nchw, params, use_bf16_matmul=False):
    """DoubleConv forward.  x_nchw: (N, Cin, H, W) -> (N, Cout, H, W)."""
    n, cin, h, w = x_nchw.shape
    cout = params["w1"].shape[-1]
    hp, wpad = h + 2, w + 2
    l = hp * wpad
    lp = _round_up(l, 128)               # lane-dense flat spatial axis
    cp = _round_up(cin, 8)               # sublane-aligned channel counts
    op = _round_up(cout, 8)

    x = x_nchw.astype(jnp.float32)
    # Single zero-padded copy of the input (~1.3x), instead of the old 9x im2col.
    xq = jnp.pad(x, ((0, 0), (0, cp - cin), (1, 1), (1, 1)))          # (N, Cp, Hp, Wp)
    xf = jnp.pad(xq.reshape(n, cp, l), ((0, 0), (0, 0), (0, lp - l)))  # (N, Cp, Lp)

    # Validity mask over the flattened padded grid (interior pixels only).
    idx = jnp.arange(lp)
    r, c = idx // wpad, idx % wpad
    mask = ((idx < l) & (r >= 1) & (r <= h) & (c >= 1) & (c <= w))
    mask = mask.astype(jnp.float32).reshape(1, lp)

    def prep_w(w_hwio, ci_pad):
        ci, co = w_hwio.shape[2], w_hwio.shape[3]
        wk = jnp.pad(w_hwio, ((0, 0), (0, 0), (0, ci_pad - ci), (0, op - co)))
        # (kh, kw, ci, co) -> (co, kh, kw, ci) -> (Op, 9*Cp): K = (kh*3+kw)*Cp + ci
        return jnp.transpose(wk, (3, 0, 1, 2)).reshape(op, 9 * ci_pad)

    def prep_v(v):
        return jnp.pad(v.reshape(-1), (0, op - cout)).reshape(op, 1)

    w1 = prep_w(params["w1"], cp)
    w2 = prep_w(params["w2"], op)
    b1, g1, bt1 = prep_v(params["b1"]), prep_v(params["g1"]), prep_v(params["bt1"])
    b2, g2, bt2 = prep_v(params["b2"]), prep_v(params["g2"]), prep_v(params["bt2"])

    kernel = functools.partial(
        _double_conv_kernel,
        wpad=wpad,
        inv_count=1.0 / float(cout * h * w),
        same_ch=(cin == cout),
        mm_dtype=jnp.bfloat16 if use_bf16_matmul else jnp.float32,
    )

    full2d = lambda i: (0, 0)
    out = pl.pallas_call(
        kernel,
        out_shape=jax.ShapeDtypeStruct((n, op, lp), jnp.float32),
        grid_spec=pltpu.PrefetchScalarGridSpec(
            num_scalar_prefetch=0,
            grid=(n,),
            in_specs=[
                pl.BlockSpec((1, cp, lp), lambda i: (i, 0, 0)),   # padded input
                pl.BlockSpec((1, lp), full2d),                    # validity mask
                pl.BlockSpec((op, 9 * cp), full2d),               # w1
                pl.BlockSpec((op, 1), full2d),                    # b1
                pl.BlockSpec((op, 1), full2d),                    # gamma1
                pl.BlockSpec((op, 1), full2d),                    # beta1
                pl.BlockSpec((op, 9 * op), full2d),               # w2
                pl.BlockSpec((op, 1), full2d),                    # b2
                pl.BlockSpec((op, 1), full2d),                    # gamma2
                pl.BlockSpec((op, 1), full2d),                    # beta2
            ],
            out_specs=pl.BlockSpec((1, op, lp), lambda i: (i, 0, 0)),
        ),
        compiler_params=pltpu.CompilerParams(dimension_semantics=("parallel",)),
    )(xf, mask, w1, b1, g1, bt1, w2, b2, g2, bt2)

    # Drop channel padding, keep interior pixels, back to NCHW (already N, C, H, W).
    out = out[:, :cout, :l].reshape(n, cout, hp, wpad)[:, :, 1:h + 1, 1:w + 1]
    return out


# ---------------------------------------------------------------------------
# Deterministic parameter initialization (synthetic, no checkpoint)
# ---------------------------------------------------------------------------
def init_params(key, chin, chout):
    k = jax.random.split(key, 8)
    return dict(
        w1=jax.random.normal(k[0], (3, 3, chin, chout), jnp.float32) * 0.1,   # HWIO
        b1=jax.random.normal(k[1], (chout,), jnp.float32) * 0.05,
        g1=1.0 + 0.1 * jax.random.normal(k[2], (chout,), jnp.float32),
        bt1=0.1 * jax.random.normal(k[3], (chout,), jnp.float32),
        w2=jax.random.normal(k[4], (3, 3, chout, chout), jnp.float32) * 0.1,
        b2=jax.random.normal(k[5], (chout,), jnp.float32) * 0.05,
        g2=1.0 + 0.1 * jax.random.normal(k[6], (chout,), jnp.float32),
        bt2=0.1 * jax.random.normal(k[7], (chout,), jnp.float32),
    )


# ---------------------------------------------------------------------------
# Pure-JAX reference (correctness check)
# ---------------------------------------------------------------------------
def _ref_stage(x_nhwc, w_hwio, b, gamma, beta):
    y = jax.lax.conv_general_dilated(
        x_nhwc, w_hwio, (1, 1), "SAME",
        dimension_numbers=("NHWC", "HWIO", "NHWC"))
    y = y + b.reshape(1, 1, 1, -1)
    mean = jnp.mean(y, axis=(1, 2, 3), keepdims=True)
    var = jnp.mean(jnp.square(y - mean), axis=(1, 2, 3), keepdims=True)
    y = (y - mean) * jax.lax.rsqrt(var + _EPS)
    y = y * gamma.reshape(1, 1, 1, -1) + beta.reshape(1, 1, 1, -1)
    return jax.nn.gelu(y, approximate=False)


def _reference_forward(x_nchw, params):
    x = jnp.transpose(x_nchw, (0, 2, 3, 1)).astype(jnp.float32)
    x1 = _ref_stage(x, params["w1"], params["b1"], params["g1"], params["bt1"])
    x2 = _ref_stage(x1, params["w2"], params["b2"], params["g2"], params["bt2"])
    if x.shape[-1] == x2.shape[-1]:
        out = (x2 + x) / 1.414
    elif x1.shape[-1] == x2.shape[-1]:
        out = (x2 + x1) / 1.414
    else:
        out = x2
    return jnp.transpose(out, (0, 3, 1, 2))


if __name__ == "__main__":
    key = jax.random.PRNGKey(0)
    kx, kp = jax.random.split(key)

    chin, chout = 4, 8
    n, h, w = 2, 16, 16
    x = jax.random.normal(kx, (n, chin, h, w), jnp.float32)   # NCHW, like PyTorch
    params = init_params(kp, chin, chout)

    out = jax.block_until_ready(jax.jit(double_conv_forward)(x, params))
    assert out.shape == (n, chout, h, w), out.shape

    ref = _reference_forward(x, params)
    err = float(jnp.max(jnp.abs(out - ref)))
    assert jnp.allclose(out, ref, atol=2e-4, rtol=2e-4), err

    print("KERNEL_OK")
</pallas_src>

<mosaic_0001>
module attributes {stable_mosaic.version = 11 : i64} {
  func.func @_double_conv_kernel(%arg0: i32, %arg1: memref<1x8x384xf32, #tpu.memory_space<vmem>>, %arg2: memref<1x384xf32, #tpu.memory_space<vmem>>, %arg3: memref<8x72xf32, #tpu.memory_space<vmem>>, %arg4: memref<8x1xf32, #tpu.memory_space<vmem>>, %arg5: memref<8x1xf32, #tpu.memory_space<vmem>>, %arg6: memref<8x1xf32, #tpu.memory_space<vmem>>, %arg7: memref<8x72xf32, #tpu.memory_space<vmem>>, %arg8: memref<8x1xf32, #tpu.memory_space<vmem>>, %arg9: memref<8x1xf32, #tpu.memory_space<vmem>>, %arg10: memref<8x1xf32, #tpu.memory_space<vmem>>, %arg11: memref<1x8x384xf32, #tpu.memory_space<vmem>>) attributes {dimension_semantics = [#tpu.dimension_semantics<parallel>], iteration_bounds = array<i64: 2>, scalar_prefetch = 0 : i64, scratch_operands = 0 : i64, tpu.core_type = #tpu.core_type<tc>, window_params = [{transform_indices = @transform_0, window_bounds = array<i64: 1, 8, 384>}, {pipeline_mode = #tpu.pipeline_mode<synchronous>, transform_indices = @transform_1, window_bounds = array<i64: 1, 384>}, {pipeline_mode = #tpu.pipeline_mode<synchronous>, transform_indices = @transform_2, window_bounds = array<i64: 8, 72>}, {pipeline_mode = #tpu.pipeline_mode<synchronous>, transform_indices = @transform_3, window_bounds = array<i64: 8, 1>}, {pipeline_mode = #tpu.pipeline_mode<synchronous>, transform_indices = @transform_4, window_bounds = array<i64: 8, 1>}, {pipeline_mode = #tpu.pipeline_mode<synchronous>, transform_indices = @transform_5, window_bounds = array<i64: 8, 1>}, {pipeline_mode = #tpu.pipeline_mode<synchronous>, transform_indices = @transform_6, window_bounds = array<i64: 8, 72>}, {pipeline_mode = #tpu.pipeline_mode<synchronous>, transform_indices = @transform_7, window_bounds = array<i64: 8, 1>}, {pipeline_mode = #tpu.pipeline_mode<synchronous>, transform_indices = @transform_8, window_bounds = array<i64: 8, 1>}, {pipeline_mode = #tpu.pipeline_mode<synchronous>, transform_indices = @transform_9, window_bounds = array<i64: 8, 1>}, {transform_indices = @transform_10, window_bounds = array<i64: 1, 8, 384>}]} {
    %c0 = arith.constant 0 : index
    %c0_0 = arith.constant 0 : index
    %c0_1 = arith.constant 0 : index
    %0 = vector.load %arg1[%c0, %c0_0, %c0_1] : memref<1x8x384xf32, #tpu.memory_space<vmem>>, vector<1x8x384xf32>
    %1 = vector.shape_cast %0 : vector<1x8x384xf32> to vector<8x384xf32>
    %c0_2 = arith.constant 0 : index
    %c0_3 = arith.constant 0 : index
    %2 = vector.load %arg2[%c0_2, %c0_3] : memref<1x384xf32, #tpu.memory_space<vmem>>, vector<1x384xf32>
    %3 = vector.extract_strided_slice %1 {offsets = [0, 365], sizes = [8, 19], strides = [1, 1]} : vector<8x384xf32> to vector<8x19xf32>
    %4 = vector.extract_strided_slice %1 {offsets = [0, 0], sizes = [8, 365], strides = [1, 1]} : vector<8x384xf32> to vector<8x365xf32>
    %5 = tpu.concatenate %3, %4 in 1 : vector<8x19xf32>, vector<8x365xf32> -> vector<8x384xf32>
    %6 = vector.extract_strided_slice %1 {offsets = [0, 366], sizes = [8, 18], strides = [1, 1]} : vector<8x384xf32> to vector<8x18xf32>
    %7 = vector.extract_strided_slice %1 {offsets = [0, 0], sizes = [8, 366], strides = [1, 1]} : vector<8x384xf32> to vector<8x366xf32>
    %8 = tpu.concatenate %6, %7 in 1 : vector<8x18xf32>, vector<8x366xf32> -> vector<8x384xf32>
    %9 = vector.extract_strided_slice %1 {offsets = [0, 367], sizes = [8, 17], strides = [1, 1]} : vector<8x384xf32> to vector<8x17xf32>
    %10 = vector.extract_strided_slice %1 {offsets = [0, 0], sizes = [8, 367], strides = [1, 1]} : vector<8x384xf32> to vector<8x367xf32>
    %11 = tpu.concatenate %9, %10 in 1 : vector<8x17xf32>, vector<8x367xf32> -> vector<8x384xf32>
    %12 = vector.extract_strided_slice %1 {offsets = [0, 383], sizes = [8, 1], strides = [1, 1]} : vector<8x384xf32> to vector<8x1xf32>
    %13 = vector.extract_strided_slice %1 {offsets = [0, 0], sizes = [8, 383], strides = [1, 1]} : vector<8x384xf32> to vector<8x383xf32>
    %14 = tpu.concatenate %12, %13 in 1 : vector<8x1xf32>, vector<8x383xf32> -> vector<8x384xf32>
    %15 = vector.extract_strided_slice %1 {offsets = [0, 1], sizes = [8, 383], strides = [1, 1]} : vector<8x384xf32> to vector<8x383xf32>
    %16 = vector.extract_strided_slice %1 {offsets = [0, 0], sizes = [8, 1], strides = [1, 1]} : vector<8x384xf32> to vector<8x1xf32>
    %17 = tpu.concatenate %15, %16 in 1 : vector<8x383xf32>, vector<8x1xf32> -> vector<8x384xf32>
    %18 = vector.extract_strided_slice %1 {offsets = [0, 17], sizes = [8, 367], strides = [1, 1]} : vector<8x384xf32> to vector<8x367xf32>
    %19 = vector.extract_strided_slice %1 {offsets = [0, 0], sizes = [8, 17], strides = [1, 1]} : vector<8x384xf32> to vector<8x17xf32>
    %20 = tpu.concatenate %18, %19 in 1 : vector<8x367xf32>, vector<8x17xf32> -> vector<8x384xf32>
    %21 = vector.extract_strided_slice %1 {offsets = [0, 18], sizes = [8, 366], strides = [1, 1]} : vector<8x384xf32> to vector<8x366xf32>
    %22 = vector.extract_strided_slice %1 {offsets = [0, 0], sizes = [8, 18], strides = [1, 1]} : vector<8x384xf32> to vector<8x18xf32>
    %23 = tpu.concatenate %21, %22 in 1 : vector<8x366xf32>, vector<8x18xf32> -> vector<8x384xf32>
    %24 = vector.extract_strided_slice %1 {offsets = [0, 19], sizes = [8, 365], strides = [1, 1]} : vector<8x384xf32> to vector<8x365xf32>
    %25 = vector.extract_strided_slice %1 {offsets = [0, 0], sizes = [8, 19], strides = [1, 1]} : vector<8x384xf32> to vector<8x19xf32>
    %26 = tpu.concatenate %24, %25 in 1 : vector<8x365xf32>, vector<8x19xf32> -> vector<8x384xf32>
    %27 = tpu.concatenate %5, %8, %11, %14, %1, %17, %20, %23, %26 in 0 : vector<8x384xf32>, vector<8x384xf32>, vector<8x384xf32>, vector<8x384xf32>, vector<8x384xf32>, vector<8x384xf32>, vector<8x384xf32>, vector<8x384xf32>, vector<8x384xf32> -> vector<72x384xf32>
    %c0_4 = arith.constant 0 : index
    %c0_5 = arith.constant 0 : index
    %28 = vector.load %arg3[%c0_4, %c0_5] : memref<8x72xf32, #tpu.memory_space<vmem>>, vector<8x72xf32>
    %cst = arith.constant dense<0.000000e+00> : vector<8x384xf32>
    %29 = tpu.matmul %28, %27, %cst {dimension_numbers = #tpu.dot_dimension_numbers<[1], [0], [0], [1], [0, 0, 1, 1], [], []>} : vector<8x72xf32>, vector<72x384xf32>, vector<8x384xf32> -> vector<8x384xf32>
    %c0_6 = arith.constant 0 : index
    %c0_7 = arith.constant 0 : index
    %30 = vector.load %arg4[%c0_6, %c0_7] : memref<8x1xf32, #tpu.memory_space<vmem>>, vector<8x1xf32>
    %31 = vector.broadcast %30 : vector<8x1xf32> to vector<8x384xf32>
    %32 = arith.addf %29, %31 : vector<8x384xf32>
    %33 = vector.broadcast %2 : vector<1x384xf32> to vector<8x384xf32>
    %34 = arith.mulf %32, %33 : vector<8x384xf32>
    %35 = vector.shape_cast %34 : vector<8x384xf32> to vector<1x8x384xf32>
    %cst_8 = arith.constant dense<0.000000e+00> : vector<1xf32>
    %36 = vector.multi_reduction <add>, %35, %cst_8 [1, 2] : vector<1x8x384xf32> to vector<1xf32>
    %37 = vector.shape_cast %36 : vector<1xf32> to vector<1x1x1xf32>
    %38 = vector.extract %37[0, 0, 0] : f32 from vector<1x1x1xf32>
    %39 = arith.mulf %34, %32 : vector<8x384xf32>
    %40 = vector.shape_cast %39 : vector<8x384xf32> to vector<1x8x384xf32>
    %cst_9 = arith.constant dense<0.000000e+00> : vector<1xf32>
    %41 = vector.multi_reduction <add>, %40, %cst_9 [1, 2] : vector<1x8x384xf32> to vector<1xf32>
    %42 = vector.shape_cast %41 : vector<1xf32> to vector<1x1x1xf32>
    %43 = vector.extract %42[0, 0, 0] : f32 from vector<1x1x1xf32>
    %cst_10 = arith.constant 4.8828125E-4 : f32
    %44 = arith.mulf %38, %cst_10 : f32
    %cst_11 = arith.constant 4.8828125E-4 : f32
    %45 = arith.mulf %43, %cst_11 : f32
    %46 = arith.mulf %44, %44 : f32
    %47 = arith.subf %45, %46 : f32
    %c0_12 = arith.constant 0 : index
    %c0_13 = arith.constant 0 : index
    %48 = vector.load %arg5[%c0_12, %c0_13] : memref<8x1xf32, #tpu.memory_space<vmem>>, vector<8x1xf32>
    %cst_14 = arith.constant 9.99999974E-6 : f32
    %49 = arith.addf %47, %cst_14 : f32
    %50 = math.rsqrt %49 : f32
    %51 = vector.broadcast %50 : f32 to vector<8x1xf32>
    %52 = arith.mulf %48, %51 : vector<8x1xf32>
    %c0_15 = arith.constant 0 : index
    %c0_16 = arith.constant 0 : index
    %53 = vector.load %arg6[%c0_15, %c0_16] : memref<8x1xf32, #tpu.memory_space<vmem>>, vector<8x1xf32>
    %54 = vector.broadcast %44 : f32 to vector<8x1xf32>
    %55 = arith.mulf %54, %52 : vector<8x1xf32>
    %56 = arith.subf %53, %55 : vector<8x1xf32>
    %57 = vector.broadcast %52 : vector<8x1xf32> to vector<8x384xf32>
    %58 = arith.mulf %32, %57 : vector<8x384xf32>
    %59 = vector.broadcast %56 : vector<8x1xf32> to vector<8x384xf32>
    %60 = arith.addf %58, %59 : vector<8x384xf32>
    %cst_17 = arith.constant 5.000000e-01 : f32
    %61 = vector.broadcast %cst_17 : f32 to vector<8x384xf32>
    %62 = arith.mulf %61, %60 : vector<8x384xf32>
    %cst_18 = arith.constant 0.707106769 : f32
    %63 = vector.broadcast %cst_18 : f32 to vector<8x384xf32>
    %64 = arith.mulf %60, %63 : vector<8x384xf32>
    %cst_19 = arith.constant 0.000000e+00 : f32
    %65 = vector.broadcast %cst_19 : f32 to vector<8x384xf32>
    %66 = arith.cmpf oge, %64, %65 : vector<8x384xf32>
    %cst_20 = arith.constant 1.000000e+00 : f32
    %cst_21 = arith.constant -1.000000e+00 : f32
    %67 = vector.broadcast %cst_20 : f32 to vector<8x384xf32>
    %68 = vector.broadcast %cst_21 : f32 to vector<8x384xf32>
    %69 = arith.select %66, %67, %68 : vector<8x384xi1>, vector<8x384xf32>
    %70 = math.absf %64 : vector<8x384xf32>
    %cst_22 = arith.constant 0.327591091 : f32
    %71 = vector.broadcast %cst_22 : f32 to vector<8x384xf32>
    %72 = arith.mulf %71, %70 : vector<8x384xf32>
    %cst_23 = arith.constant 1.000000e+00 : f32
    %73 = vector.broadcast %cst_23 : f32 to vector<8x384xf32>
    %74 = arith.addf %73, %72 : vector<8x384xf32>
    %cst_24 = arith.constant 1.000000e+00 : f32
    %75 = vector.broadcast %cst_24 : f32 to vector<8x384xf32>
    %76 = arith.divf %75, %74 : vector<8x384xf32>
    %cst_25 = arith.constant 1.06140542 : f32
    %77 = vector.broadcast %cst_25 : f32 to vector<8x384xf32>
    %78 = arith.mulf %77, %76 : vector<8x384xf32>
    %cst_26 = arith.constant -1.45315206 : f32
    %79 = vector.broadcast %cst_26 : f32 to vector<8x384xf32>
    %80 = arith.addf %78, %79 : vector<8x384xf32>
    %81 = arith.mulf %80, %76 : vector<8x384xf32>
    %cst_27 = arith.constant 1.42141378 : f32
    %82 = vector.broadcast %cst_27 : f32 to vector<8x384xf32>
    %83 = arith.addf %81, %82 : vector<8x384xf32>
    %84 = arith.mulf %83, %76 : vector<8x384xf32>
    %cst_28 = arith.constant -0.284496725 : f32
    %85 = vector.broadcast %cst_28 : f32 to vector<8x384xf32>
    %86 = arith.addf %84, %85 : vector<8x384xf32>
    %87 = arith.mulf %86, %76 : vector<8x384xf32>
    %cst_29 = arith.constant 0.254829586 : f32
    %88 = vector.broadcast %cst_29 : f32 to vector<8x384xf32>
    %89 = arith.addf %87, %88 : vector<8x384xf32>
    %90 = arith.mulf %89, %76 : vector<8x384xf32>
    %cst_30 = arith.constant 0.000000e+00 : f32
    %91 = vector.broadcast %cst_30 : f32 to vector<8x384xf32>
    %92 = arith.subf %91, %70 : vector<8x384xf32>
    %93 = arith.mulf %92, %70 : vector<8x384xf32>
    %94 = math.exp %93 : vector<8x384xf32>
    %95 = arith.mulf %90, %94 : vector<8x384xf32>
    %cst_31 = arith.constant 1.000000e+00 : f32
    %96 = vector.broadcast %cst_31 : f32 to vector<8x384xf32>
    %97 = arith.subf %96, %95 : vector<8x384xf32>
    %98 = arith.mulf %69, %97 : vector<8x384xf32>
    %cst_32 = arith.constant 1.000000e+00 : f32
    %99 = vector.broadcast %cst_32 : f32 to vector<8x384xf32>
    %100 = arith.addf %99, %98 : vector<8x384xf32>
    %101 = arith.mulf %62, %100 : vector<8x384xf32>
    %102 = vector.broadcast %2 : vector<1x384xf32> to vector<8x384xf32>
    %103 = arith.mulf %101, %102 : vector<8x384xf32>
    %104 = vector.extract_strided_slice %103 {offsets = [0, 365], sizes = [8, 19], strides = [1, 1]} : vector<8x384xf32> to vector<8x19xf32>
    %105 = vector.extract_strided_slice %103 {offsets = [0, 0], sizes = [8, 365], strides = [1, 1]} : vector<8x384xf32> to vector<8x365xf32>
    %106 = tpu.concatenate %104, %105 in 1 : vector<8x19xf32>, vector<8x365xf32> -> vector<8x384xf32>
    %107 = vector.extract_strided_slice %103 {offsets = [0, 366], sizes = [8, 18], strides = [1, 1]} : vector<8x384xf32> to vector<8x18xf32>
    %108 = vector.extract_strided_slice %103 {offsets = [0, 0], sizes = [8, 366], strides = [1, 1]} : vector<8x384xf32> to vector<8x366xf32>
    %109 = tpu.concatenate %107, %108 in 1 : vector<8x18xf32>, vector<8x366xf32> -> vector<8x384xf32>
    %110 = vector.extract_strided_slice %103 {offsets = [0, 367], sizes = [8, 17], strides = [1, 1]} : vector<8x384xf32> to vector<8x17xf32>
    %111 = vector.extract_strided_slice %103 {offsets = [0, 0], sizes = [8, 367], strides = [1, 1]} : vector<8x384xf32> to vector<8x367xf32>
    %112 = tpu.concatenate %110, %111 in 1 : vector<8x17xf32>, vector<8x367xf32> -> vector<8x384xf32>
    %113 = vector.extract_strided_slice %103 {offsets = [0, 383], sizes = [8, 1], strides = [1, 1]} : vector<8x384xf32> to vector<8x1xf32>
    %114 = vector.extract_strided_slice %103 {offsets = [0, 0], sizes = [8, 383], strides = [1, 1]} : vector<8x384xf32> to vector<8x383xf32>
    %115 = tpu.concatenate %113, %114 in 1 : vector<8x1xf32>, vector<8x383xf32> -> vector<8x384xf32>
    %116 = vector.extract_strided_slice %103 {offsets = [0, 1], sizes = [8, 383], strides = [1, 1]} : vector<8x384xf32> to vector<8x383xf32>
    %117 = vector.extract_strided_slice %103 {offsets = [0, 0], sizes = [8, 1], strides = [1, 1]} : vector<8x384xf32> to vector<8x1xf32>
    %118 = tpu.concatenate %116, %117 in 1 : vector<8x383xf32>, vector<8x1xf32> -> vector<8x384xf32>
    %119 = vector.extract_strided_slice %103 {offsets = [0, 17], sizes = [8, 367], strides = [1, 1]} : vector<8x384xf32> to vector<8x367xf32>
    %120 = vector.extract_strided_slice %103 {offsets = [0, 0], sizes = [8, 17], strides = [1, 1]} : vector<8x384xf32> to vector<8x17xf32>
    %121 = tpu.concatenate %119, %120 in 1 : vector<8x367xf32>, vector<8x17xf32> -> vector<8x384xf32>
    %122 = vector.extract_strided_slice %103 {offsets = [0, 18], sizes = [8, 366], strides = [1, 1]} : vector<8x384xf32> to vector<8x366xf32>
    %123 = vector.extract_strided_slice %103 {offsets = [0, 0], sizes = [8, 18], strides = [1, 1]} : vector<8x384xf32> to vector<8x18xf32>
    %124 = tpu.concatenate %122, %123 in 1 : vector<8x366xf32>, vector<8x18xf32> -> vector<8x384xf32>
    %125 = vector.extract_strided_slice %103 {offsets = [0, 19], sizes = [8, 365], strides = [1, 1]} : vector<8x384xf32> to vector<8x365xf32>
    %126 = vector.extract_strided_slice %103 {offsets = [0, 0], sizes = [8, 19], strides = [1, 1]} : vector<8x384xf32> to vector<8x19xf32>
    %127 = tpu.concatenate %125, %126 in 1 : vector<8x365xf32>, vector<8x19xf32> -> vector<8x384xf32>
    %128 = tpu.concatenate %106, %109, %112, %115, %103, %118, %121, %124, %127 in 0 : vector<8x384xf32>, vector<8x384xf32>, vector<8x384xf32>, vector<8x384xf32>, vector<8x384xf32>, vector<8x384xf32>, vector<8x384xf32>, vector<8x384xf32>, vector<8x384xf32> -> vector<72x384xf32>
    %c0_33 = arith.constant 0 : index
    %c0_34 = arith.constant 0 : index
    %129 = vector.load %arg7[%c0_33, %c0_34] : memref<8x72xf32, #tpu.memory_space<vmem>>, vector<8x72xf32>
    %cst_35 = arith.constant dense<0.000000e+00> : vector<8x384xf32>
    %130 = tpu.matmul %129, %128, %cst_35 {dimension_numbers = #tpu.dot_dimension_numbers<[1], [0], [0], [1], [0, 0, 1, 1], [], []>} : vector<8x72xf32>, vector<72x384xf32>, vector<8x384xf32> -> vector<8x384xf32>
    %c0_36 = arith.constant 0 : index
    %c0_37 = arith.constant 0 : index
    %131 = vector.load %arg8[%c0_36, %c0_37] : memref<8x1xf32, #tpu.memory_space<vmem>>, vector<8x1xf32>
    %132 = vector.broadcast %131 : vector<8x1xf32> to vector<8x384xf32>
    %133 = arith.addf %130, %132 : vector<8x384xf32>
    %134 = vector.broadcast %2 : vector<1x384xf32> to vector<8x384xf32>
    %135 = arith.mulf %133, %134 : vector<8x384xf32>
    %136 = vector.shape_cast %135 : vector<8x384xf32> to vector<1x8x384xf32>
    %cst_38 = arith.constant dense<0.000000e+00> : vector<1xf32>
    %137 = vector.multi_reduction <add>, %136, %cst_38 [1, 2] : vector<1x8x384xf32> to vector<1xf32>
    %138 = vector.shape_cast %137 : vector<1xf32> to vector<1x1x1xf32>
    %139 = vector.extract %138[0, 0, 0] : f32 from vector<1x1x1xf32>
    %140 = arith.mulf %135, %133 : vector<8x384xf32>
    %141 = vector.shape_cast %140 : vector<8x384xf32> to vector<1x8x384xf32>
    %cst_39 = arith.constant dense<0.000000e+00> : vector<1xf32>
    %142 = vector.multi_reduction <add>, %141, %cst_39 [1, 2] : vector<1x8x384xf32> to vector<1xf32>
    %143 = vector.shape_cast %142 : vector<1xf32> to vector<1x1x1xf32>
    %144 = vector.extract %143[0, 0, 0] : f32 from vector<1x1x1xf32>
    %cst_40 = arith.constant 4.8828125E-4 : f32
    %145 = arith.mulf %139, %cst_40 : f32
    %cst_41 = arith.constant 4.8828125E-4 : f32
    %146 = arith.mulf %144, %cst_41 : f32
    %147 = arith.mulf %145, %145 : f32
    %148 = arith.subf %146, %147 : f32
    %c0_42 = arith.constant 0 : index
    %c0_43 = arith.constant 0 : index
    %149 = vector.load %arg9[%c0_42, %c0_43] : memref<8x1xf32, #tpu.memory_space<vmem>>, vector<8x1xf32>
    %cst_44 = arith.constant 9.99999974E-6 : f32
    %150 = arith.addf %148, %cst_44 : f32
    %151 = math.rsqrt %150 : f32
    %152 = vector.broadcast %151 : f32 to vector<8x1xf32>
    %153 = arith.mulf %149, %152 : vector<8x1xf32>
    %c0_45 = arith.constant 0 : index
    %c0_46 = arith.constant 0 : index
    %154 = vector.load %arg10[%c0_45, %c0_46] : memref<8x1xf32, #tpu.memory_space<vmem>>, vector<8x1xf32>
    %155 = vector.broadcast %145 : f32 to vector<8x1xf32>
    %156 = arith.mulf %155, %153 : vector<8x1xf32>
    %157 = arith.subf %154, %156 : vector<8x1xf32>
    %158 = vector.broadcast %153 : vector<8x1xf32> to vector<8x384xf32>
    %159 = arith.mulf %133, %158 : vector<8x384xf32>
    %160 = vector.broadcast %157 : vector<8x1xf32> to vector<8x384xf32>
    %161 = arith.addf %159, %160 : vector<8x384xf32>
    %cst_47 = arith.constant 5.000000e-01 : f32
    %162 = vector.broadcast %cst_47 : f32 to vector<8x384xf32>
    %163 = arith.mulf %162, %161 : vector<8x384xf32>
    %cst_48 = arith.constant 0.707106769 : f32
    %164 = vector.broadcast %cst_48 : f32 to vector<8x384xf32>
    %165 = arith.mulf %161, %164 : vector<8x384xf32>
    %cst_49 = arith.constant 0.000000e+00 : f32
    %166 = vector.broadcast %cst_49 : f32 to vector<8x384xf32>
    %167 = arith.cmpf oge, %165, %166 : vector<8x384xf32>
    %cst_50 = arith.constant 1.000000e+00 : f32
    %cst_51 = arith.constant -1.000000e+00 : f32
    %168 = vector.broadcast %cst_50 : f32 to vector<8x384xf32>
    %169 = vector.broadcast %cst_51 : f32 to vector<8x384xf32>
    %170 = arith.select %167, %168, %169 : vector<8x384xi1>, vector<8x384xf32>
    %171 = math.absf %165 : vector<8x384xf32>
    %cst_52 = arith.constant 0.327591091 : f32
    %172 = vector.broadcast %cst_52 : f32 to vector<8x384xf32>
    %173 = arith.mulf %172, %171 : vector<8x384xf32>
    %cst_53 = arith.constant 1.000000e+00 : f32
    %174 = vector.broadcast %cst_53 : f32 to vector<8x384xf32>
    %175 = arith.addf %174, %173 : vector<8x384xf32>
    %cst_54 = arith.constant 1.000000e+00 : f32
    %176 = vector.broadcast %cst_54 : f32 to vector<8x384xf32>
    %177 = arith.divf %176, %175 : vector<8x384xf32>
    %cst_55 = arith.constant 1.06140542 : f32
    %178 = vector.broadcast %cst_55 : f32 to vector<8x384xf32>
    %179 = arith.mulf %178, %177 : vector<8x384xf32>
    %cst_56 = arith.constant -1.45315206 : f32
    %180 = vector.broadcast %cst_56 : f32 to vector<8x384xf32>
    %181 = arith.addf %179, %180 : vector<8x384xf32>
    %182 = arith.mulf %181, %177 : vector<8x384xf32>
    %cst_57 = arith.constant 1.42141378 : f32
    %183 = vector.broadcast %cst_57 : f32 to vector<8x384xf32>
    %184 = arith.addf %182, %183 : vector<8x384xf32>
    %185 = arith.mulf %184, %177 : vector<8x384xf32>
    %cst_58 = arith.constant -0.284496725 : f32
    %186 = vector.broadcast %cst_58 : f32 to vector<8x384xf32>
    %187 = arith.addf %185, %186 : vector<8x384xf32>
    %188 = arith.mulf %187, %177 : vector<8x384xf32>
    %cst_59 = arith.constant 0.254829586 : f32
    %189 = vector.broadcast %cst_59 : f32 to vector<8x384xf32>
    %190 = arith.addf %188, %189 : vector<8x384xf32>
    %191 = arith.mulf %190, %177 : vector<8x384xf32>
    %cst_60 = arith.constant 0.000000e+00 : f32
    %192 = vector.broadcast %cst_60 : f32 to vector<8x384xf32>
    %193 = arith.subf %192, %171 : vector<8x384xf32>
    %194 = arith.mulf %193, %171 : vector<8x384xf32>
    %195 = math.exp %194 : vector<8x384xf32>
    %196 = arith.mulf %191, %195 : vector<8x384xf32>
    %cst_61 = arith.constant 1.000000e+00 : f32
    %197 = vector.broadcast %cst_61 : f32 to vector<8x384xf32>
    %198 = arith.subf %197, %196 : vector<8x384xf32>
    %199 = arith.mulf %170, %198 : vector<8x384xf32>
    %cst_62 = arith.constant 1.000000e+00 : f32
    %200 = vector.broadcast %cst_62 : f32 to vector<8x384xf32>
    %201 = arith.addf %200, %199 : vector<8x384xf32>
    %202 = arith.mulf %163, %201 : vector<8x384xf32>
    %203 = arith.addf %202, %103 : vector<8x384xf32>
    %cst_63 = arith.constant 0.70721358 : f32
    %204 = vector.broadcast %cst_63 : f32 to vector<8x384xf32>
    %205 = arith.mulf %203, %204 : vector<8x384xf32>
    %c0_64 = arith.constant 0 : index
    %c0_65 = arith.constant 0 : index
    %c0_66 = arith.constant 0 : index
    %206 = vector.load %arg11[%c0_64, %c0_65, %c0_66] : memref<1x8x384xf32, #tpu.memory_space<vmem>>, vector<1x8x384xf32>
    %207 = vector.shape_cast %206 : vector<1x8x384xf32> to vector<8x384xf32>
    %208 = vector.shape_cast %205 : vector<8x384xf32> to vector<1x8x384xf32>
    tpu.vector_store %arg11[%c0_64, %c0_65, %c0_66], %208 {strides = array<i32>} : memref<1x8x384xf32, #tpu.memory_space<vmem>>, vector<1x8x384xf32>,
    return
  }
  func.func @transform_0(%arg0: i32) -> (i32, i32, i32) {
    %c0_i32 = arith.constant 0 : i32
    %c0_i32_0 = arith.constant 0 : i32
    %c0_i32_1 = arith.constant 0 : i32
    return %arg0, %c0_i32, %c0_i32_0 : i32, i32, i32
  }
  func.func @transform_1(%arg0: i32) -> (i32, i32) {
    %c0_i32 = arith.constant 0 : i32
    %c0_i32_0 = arith.constant 0 : i32
    %c0_i32_1 = arith.constant 0 : i32
    return %c0_i32, %c0_i32_0 : i32, i32
  }
  func.func @transform_2(%arg0: i32) -> (i32, i32) {
    %c0_i32 = arith.constant 0 : i32
    %c0_i32_0 = arith.constant 0 : i32
    %c0_i32_1 = arith.constant 0 : i32
    return %c0_i32, %c0_i32_0 : i32, i32
  }
  func.func @transform_3(%arg0: i32) -> (i32, i32) {
    %c0_i32 = arith.constant 0 : i32
    %c0_i32_0 = arith.constant 0 : i32
    %c0_i32_1 = arith.constant 0 : i32
    return %c0_i32, %c0_i32_0 : i32, i32
  }
  func.func @transform_4(%arg0: i32) -> (i32, i32) {
    %c0_i32 = arith.constant 0 : i32
    %c0_i32_0 = arith.constant 0 : i32
    %c0_i32_1 = arith.constant 0 : i32
    return %c0_i32, %c0_i32_0 : i32, i32
  }
  func.func @transform_5(%arg0: i32) -> (i32, i32) {
    %c0_i32 = arith.constant 0 : i32
    %c0_i32_0 = arith.constant 0 : i32
    %c0_i32_1 = arith.constant 0 : i32
    return %c0_i32, %c0_i32_0 : i32, i32
  }
  func.func @transform_6(%arg0: i32) -> (i32, i32) {
    %c0_i32 = arith.constant 0 : i32
    %c0_i32_0 = arith.constant 0 : i32
    %c0_i32_1 = arith.constant 0 : i32
    return %c0_i32, %c0_i32_0 : i32, i32
  }
  func.func @transform_7(%arg0: i32) -> (i32, i32) {
    %c0_i32 = arith.constant 0 : i32
    %c0_i32_0 = arith.constant 0 : i32
    %c0_i32_1 = arith.constant 0 : i32
    return %c0_i32, %c0_i32_0 : i32, i32
  }
  func.func @transform_8(%arg0: i32) -> (i32, i32) {
    %c0_i32 = arith.constant 0 : i32
    %c0_i32_0 = arith.constant 0 : i32
    %c0_i32_1 = arith.constant 0 : i32
    return %c0_i32, %c0_i32_0 : i32, i32
  }
  func.func @transform_9(%arg0: i32) -> (i32, i32) {
    %c0_i32 = arith.constant 0 : i32
    %c0_i32_0 = arith.constant 0 : i32
    %c0_i32_1 = arith.constant 0 : i32
    return %c0_i32, %c0_i32_0 : i32, i32
  }
  func.func @transform_10(%arg0: i32) -> (i32, i32, i32) {
    %c0_i32 = arith.constant 0 : i32
    %c0_i32_0 = arith.constant 0 : i32
    %c0_i32_1 = arith.constant 0 : i32
    return %arg0, %c0_i32, %c0_i32_0 : i32, i32, i32
  }
}

</mosaic_0001>

<llo_original>
// kernel: double_conv_forward.1
$region0: #{double_conv_forward.1}
  #allocation0 [shape = 'u32[]', space=smem, size = 0x4, offset = 0x4, fixed_abs, tag = 'smem constant byte address 0x4 - core index']
  #allocation1 [shape = 'u32[72,128]{1,0:T(1,128)}', space=vmem, size = 0x9000, scoped, tag = 'internal scratch']
  %s0 = inlined_call_operand.vmem [shape: f32[2,8,384], index: 0, kind: input, shape index: {}]
  %s1 = inlined_call_operand.vmem [shape: f32[1,384], index: 1, kind: input, shape index: {}]
  %s2 = inlined_call_operand.vmem [shape: f32[8,72], index: 2, kind: input, shape index: {}]
  %s3 = inlined_call_operand.vmem [shape: f32[8,1], index: 3, kind: input, shape index: {}]
  %s4 = inlined_call_operand.vmem [shape: f32[8,1], index: 4, kind: input, shape index: {}]
  %s5 = inlined_call_operand.vmem [shape: f32[8,1], index: 5, kind: input, shape index: {}]
  %s6 = inlined_call_operand.vmem [shape: f32[8,72], index: 6, kind: input, shape index: {}]
  %s7 = inlined_call_operand.vmem [shape: f32[8,1], index: 7, kind: input, shape index: {}]
  %s8 = inlined_call_operand.vmem [shape: f32[8,1], index: 8, kind: input, shape index: {}]
  %s9 = inlined_call_operand.vmem [shape: f32[8,1], index: 9, kind: input, shape index: {}]
  %s10 = inlined_call_operand.vmem [shape: f32[2,8,384], index: 10, kind: output, shape index: {}]
  %s11 = sld [smem:[#allocation0]]
  $region73: #{double_conv_forward.1} parent=0
    _
  %s13 = ssub.s32 1, %s11
  %s14 = scalar_select 0, %s13, %s11
  loop: start=0, step=1, limit=4
  $region2: #{double_conv_forward.1} parent=0 // loop_pre_header
    _
  $region3: #{double_conv_forward.1} parent=0 // loop_header
    %s16 = sphi 0, %s20
    %p17 = scmp.ge.s32.totalorder %s16, 4
    %s26 = sphi 0, %s28
    %s29 = sphi 0, %s26
    %s30 = sphi 0, %s29
    %s46 = sphi 0, %s30
    %s50 = sphi 0, %s50
    %s52 = sphi 0, %s50
    %s53 = sphi 0, %s52
    %s67 = sphi 0, %s53
    %s71 = sphi 0, %s71
    %s73 = sphi 0, %s71
    %s74 = sphi 0, %s73
    %s88 = sphi 0, %s74
    %s92 = sphi 0, %s92
    %s94 = sphi 0, %s92
    %s95 = sphi 0, %s94
    %s109 = sphi 0, %s95
    %s113 = sphi 0, %s113
    %s115 = sphi 0, %s113
    %s116 = sphi 0, %s115
    %s130 = sphi 0, %s116
    %s134 = sphi 0, %s134
    %s136 = sphi 0, %s134
    %s137 = sphi 0, %s136
    %s151 = sphi 0, %s137
    %s155 = sphi 0, %s155
    %s157 = sphi 0, %s155
    %s158 = sphi 0, %s157
    %s172 = sphi 0, %s158
    %s176 = sphi 0, %s176
    %s178 = sphi 0, %s176
    %s179 = sphi 0, %s178
    %s193 = sphi 0, %s179
    %s197 = sphi 0, %s197
    %s199 = sphi 0, %s197
    %s200 = sphi 0, %s199
    %s214 = sphi 0, %s200
    %s218 = sphi 0, %s218
    %s220 = sphi 0, %s218
    %s221 = sphi 0, %s220
    %s235 = sphi 0, %s221
    %s241 = sphi 0, %s243
    %s244 = sphi 0, %s241
    %s245 = sphi 0, %s244
    %s261 = sphi 0, %s245
  $region4: #{double_conv_forward.1} parent=0 // loop_header_branch
    %19 = sbr.rel (%p17) target = $region8
  $region5: #{double_conv_forward.1} parent=0 // loop_body
    %s21 = ssub.s32 %s16, 1
    %s22 = ssub.s32 %s16, 2
    %s23 = sadd.s32 %s16, 1
    %s24 = ssub.s32 %s16, %s23
    %p25 = scmp.eq.s32.totalorder %s24, 0
    %s27 = sadd.s32 %s26, 1
    %s28 = scalar_select %p25, %s26, %s27
    %p31 = pneg %p25
    %p32 = scmp.eq.s32.totalorder %s16, 1
    %p33 = por %p31, %p32
    %p34 = scmp.ne.s32.totalorder %s26, %s29
    %p35 = scmp.eq.s32.totalorder %s16, 0
    %p36 = por %p34, %p35
    %p37 = scmp.ne.s32.totalorder %s26, %s29
    %p38 = scmp.eq.s32.totalorder %s21, 1
    %p39 = por %p37, %p38
    %p40 = scmp.ne.s32.totalorder %s29, %s30
    %p41 = scmp.eq.s32.totalorder %s21, 0
    %p42 = por %p40, %p41
    %p43 = scmp.ne.s32.totalorder %s29, %s30
    %p44 = scmp.eq.s32.totalorder %s22, 1
    %p45 = por %p43, %p44
    %p47 = scmp.ne.s32.totalorder %s30, %s46
    %p48 = scmp.eq.s32.totalorder %s22, 0
    %p49 = por %p47, %p48
    %s51 = sadd.s32 %s50, 1
    %p54 = scmp.eq.s32.totalorder %s16, 1
    %p55 = scmp.ne.s32.totalorder %s50, %s52
    %p56 = scmp.eq.s32.totalorder %s16, 0
    %p57 = por %p55, %p56
    %p58 = scmp.ne.s32.totalorder %s50, %s52
    %p59 = scmp.eq.s32.totalorder %s21, 1
    %p60 = por %p58, %p59
    %p61 = scmp.ne.s32.totalorder %s52, %s53
    %p62 = scmp.eq.s32.totalorder %s21, 0
    %p63 = por %p61, %p62
    %p64 = scmp.ne.s32.totalorder %s52, %s53
    %p65 = scmp.eq.s32.totalorder %s22, 1
    %p66 = por %p64, %p65
    %p68 = scmp.ne.s32.totalorder %s53, %s67
    %p69 = scmp.eq.s32.totalorder %s22, 0
    %p70 = por %p68, %p69
    %s72 = sadd.s32 %s71, 1
    %p75 = scmp.eq.s32.totalorder %s16, 1
    %p76 = scmp.ne.s32.totalorder %s71, %s73
    %p77 = scmp.eq.s32.totalorder %s16, 0
    %p78 = por %p76, %p77
    %p79 = scmp.ne.s32.totalorder %s71, %s73
    %p80 = scmp.eq.s32.totalorder %s21, 1
    %p81 = por %p79, %p80
    %p82 = scmp.ne.s32.totalorder %s73, %s74
    %p83 = scmp.eq.s32.totalorder %s21, 0
    %p84 = por %p82, %p83
    %p85 = scmp.ne.s32.totalorder %s73, %s74
    %p86 = scmp.eq.s32.totalorder %s22, 1
    %p87 = por %p85, %p86
    %p89 = scmp.ne.s32.totalorder %s74, %s88
    %p90 = scmp.eq.s32.totalorder %s22, 0
    %p91 = por %p89, %p90
    %s93 = sadd.s32 %s92, 1
    %p96 = scmp.eq.s32.totalorder %s16, 1
    %p97 = scmp.ne.s32.totalorder %s92, %s94
    %p98 = scmp.eq.s32.totalorder %s16, 0
    %p99 = por %p97, %p98
    %p100 = scmp.ne.s32.totalorder %s92, %s94
    %p101 = scmp.eq.s32.totalorder %s21, 1
    %p102 = por %p100, %p101
    %p103 = scmp.ne.s32.totalorder %s94, %s95
    %p104 = scmp.eq.s32.totalorder %s21, 0
    %p105 = por %p103, %p104
    %p106 = scmp.ne.s32.totalorder %s94, %s95
    %p107 = scmp.eq.s32.totalorder %s22, 1
    %p108 = por %p106, %p107
    %p110 = scmp.ne.s32.totalorder %s95, %s109
    %p111 = scmp.eq.s32.totalorder %s22, 0
    %p112 = por %p110, %p111
    %s114 = sadd.s32 %s113, 1
    %p117 = scmp.eq.s32.totalorder %s16, 1
    %p118 = scmp.ne.s32.totalorder %s113, %s115
    %p119 = scmp.eq.s32.totalorder %s16, 0
    %p120 = por %p118, %p119
    %p121 = scmp.ne.s32.totalorder %s113, %s115
    %p122 = scmp.eq.s32.totalorder %s21, 1
    %p123 = por %p121, %p122
    %p124 = scmp.ne.s32.totalorder %s115, %s116
    %p125 = scmp.eq.s32.totalorder %s21, 0
    %p126 = por %p124, %p125
    %p127 = scmp.ne.s32.totalorder %s115, %s116
    %p128 = scmp.eq.s32.totalorder %s22, 1
    %p129 = por %p127, %p128
    %p131 = scmp.ne.s32.totalorder %s116, %s130
    %p132 = scmp.eq.s32.totalorder %s22, 0
    %p133 = por %p131, %p132
    %s135 = sadd.s32 %s134, 1
    %p138 = scmp.eq.s32.totalorder %s16, 1
    %p139 = scmp.ne.s32.totalorder %s134, %s136
    %p140 = scmp.eq.s32.totalorder %s16, 0
    %p141 = por %p139, %p140
    %p142 = scmp.ne.s32.totalorder %s134, %s136
    %p143 = scmp.eq.s32.totalorder %s21, 1
    %p144 = por %p142, %p143
    %p145 = scmp.ne.s32.totalorder %s136, %s137
    %p146 = scmp.eq.s32.totalorder %s21, 0
    %p147 = por %p145, %p146
    %p148 = scmp.ne.s32.totalorder %s136, %s137
    %p149 = scmp.eq.s32.totalorder %s22, 1
    %p150 = por %p148, %p149
    %p152 = scmp.ne.s32.totalorder %s137, %s151
    %p153 = scmp.eq.s32.totalorder %s22, 0
    %p154 = por %p152, %p153
    %s156 = sadd.s32 %s155, 1
    %p159 = scmp.eq.s32.totalorder %s16, 1
    %p160 = scmp.ne.s32.totalorder %s155, %s157
    %p161 = scmp.eq.s32.totalorder %s16, 0
    %p162 = por %p160, %p161
    %p163 = scmp.ne.s32.totalorder %s155, %s157
    %p164 = scmp.eq.s32.totalorder %s21, 1
    %p165 = por %p163, %p164
    %p166 = scmp.ne.s32.totalorder %s157, %s158
    %p167 = scmp.eq.s32.totalorder %s21, 0
    %p168 = por %p166, %p167
    %p169 = scmp.ne.s32.totalorder %s157, %s158
    %p170 = scmp.eq.s32.totalorder %s22, 1
    %p171 = por %p169, %p170
    %p173 = scmp.ne.s32.totalorder %s158, %s172
    %p174 = scmp.eq.s32.totalorder %s22, 0
    %p175 = por %p173, %p174
    %s177 = sadd.s32 %s176, 1
    %p180 = scmp.eq.s32.totalorder %s16, 1
    %p181 = scmp.ne.s32.totalorder %s176, %s178
    %p182 = scmp.eq.s32.totalorder %s16, 0
    %p183 = por %p181, %p182
    %p184 = scmp.ne.s32.totalorder %s176, %s178
    %p185 = scmp.eq.s32.totalorder %s21, 1
    %p186 = por %p184, %p185
    %p187 = scmp.ne.s32.totalorder %s178, %s179
    %p188 = scmp.eq.s32.totalorder %s21, 0
    %p189 = por %p187, %p188
    %p190 = scmp.ne.s32.totalorder %s178, %s179
    %p191 = scmp.eq.s32.totalorder %s22, 1
    %p192 = por %p190, %p191
    %p194 = scmp.ne.s32.totalorder %s179, %s193
    %p195 = scmp.eq.s32.totalorder %s22, 0
    %p196 = por %p194, %p195
    %s198 = sadd.s32 %s197, 1
    %p201 = scmp.eq.s32.totalorder %s16, 1
    %p202 = scmp.ne.s32.totalorder %s197, %s199
    %p203 = scmp.eq.s32.totalorder %s16, 0
    %p204 = por %p202, %p203
    %p205 = scmp.ne.s32.totalorder %s197, %s199
    %p206 = scmp.eq.s32.totalorder %s21, 1
    %p207 = por %p205, %p206
    %p208 = scmp.ne.s32.totalorder %s199, %s200
    %p209 = scmp.eq.s32.totalorder %s21, 0
    %p210 = por %p208, %p209
    %p211 = scmp.ne.s32.totalorder %s199, %s200
    %p212 = scmp.eq.s32.totalorder %s22, 1
    %p213 = por %p211, %p212
    %p215 = scmp.ne.s32.totalorder %s200, %s214
    %p216 = scmp.eq.s32.totalorder %s22, 0
    %p217 = por %p215, %p216
    %s219 = sadd.s32 %s218, 1
    %p222 = scmp.eq.s32.totalorder %s16, 1
    %p223 = scmp.ne.s32.totalorder %s218, %s220
    %p224 = scmp.eq.s32.totalorder %s16, 0
    %p225 = por %p223, %p224
    %p226 = scmp.ne.s32.totalorder %s218, %s220
    %p227 = scmp.eq.s32.totalorder %s21, 1
    %p228 = por %p226, %p227
    %p229 = scmp.ne.s32.totalorder %s220, %s221
    %p230 = scmp.eq.s32.totalorder %s21, 0
    %p231 = por %p229, %p230
    %p232 = scmp.ne.s32.totalorder %s220, %s221
    %p233 = scmp.eq.s32.totalorder %s22, 1
    %p234 = por %p232, %p233
    %p236 = scmp.ne.s32.totalorder %s221, %s235
    %p237 = scmp.eq.s32.totalorder %s22, 0
    %p238 = por %p236, %p237
    %s239 = ssub.s32 %s16, %s23
    %p240 = scmp.eq.s32.totalorder %s239, 0
    %s242 = sadd.s32 %s241, 1
    %s243 = scalar_select %p240, %s241, %s242
    %p246 = pneg %p240
    %p247 = scmp.eq.s32.totalorder %s16, 1
    %p248 = por %p246, %p247
    %p249 = scmp.ne.s32.totalorder %s241, %s244
    %p250 = scmp.eq.s32.totalorder %s16, 0
    %p251 = por %p249, %p250
    %p252 = scmp.ne.s32.totalorder %s241, %s244
    %p253 = scmp.eq.s32.totalorder %s21, 1
    %p254 = por %p252, %p253
    %p255 = scmp.ne.s32.totalorder %s244, %s245
    %p256 = scmp.eq.s32.totalorder %s21, 0
    %p257 = por %p255, %p256
    %p258 = scmp.ne.s32.totalorder %s244, %s245
    %p259 = scmp.eq.s32.totalorder %s22, 1
    %p260 = por %p258, %p259
    %p262 = scmp.ne.s32.totalorder %s245, %s261
    %p263 = scmp.eq.s32.totalorder %s22, 0
    %p264 = por %p262, %p263
    %p265 = scmp.le.s32.totalorder 1, %s16
    %p266 = scmp.lt.s32.totalorder %s16, 3
    %p267 = pnand %p265, %p266
    %p268 = pneg %p267
    // Predicated region
    $region9: #{double_conv_forward.1} parent=5 // pred_check
      _
    $region10: #{double_conv_forward.1} parent=5 // pred_check_branch
      %270 = sbr.rel (%p267) target = $region12
    $region11: #{double_conv_forward.1} parent=5 // pred_region
      %s271 = ssub.s32 %s16, 1
      // Predicated region
      $region13: #{double_conv_forward.1} parent=11 // pred_check
        %p272 = pneg %p63
      $region14: #{double_conv_forward.1} parent=11 // pred_check_branch
        %274 = sbr.rel (%p272) target = $region16
      $region15: #{double_conv_forward.1} parent=11 // pred_region
        _
      $region16: #{double_conv_forward.1} parent=11 // pred_fallthru
        _
      // Predicated region
      $region17: #{double_conv_forward.1} parent=11 // pred_check
        %p275 = pneg %p84
      $region18: #{double_conv_forward.1} parent=11 // pred_check_branch
        %277 = sbr.rel (%p275) target = $region20
      $region19: #{double_conv_forward.1} parent=11 // pred_region
        _
      $region20: #{double_conv_forward.1} parent=11 // pred_fallthru
        _
      // Predicated region
      $region21: #{double_conv_forward.1} parent=11 // pred_check
        %p278 = pneg %p105
      $region22: #{double_conv_forward.1} parent=11 // pred_check_branch
        %280 = sbr.rel (%p278) target = $region24
      $region23: #{double_conv_forward.1} parent=11 // pred_region
        _
      $region24: #{double_conv_forward.1} parent=11 // pred_fallthru
        _
      // Predicated region
      $region25: #{double_conv_forward.1} parent=11 // pred_check
        %p281 = pneg %p126
      $region26: #{double_conv_forward.1} parent=11 // pred_check_branch
        %283 = sbr.rel (%p281) target = $region28
      $region27: #{double_conv_forward.1} parent=11 // pred_region
        _
      $region28: #{double_conv_forward.1} parent=11 // pred_fallthru
        _
      // Predicated region
      $region29: #{double_conv_forward.1} parent=11 // pred_check
        %p284 = pneg %p147
      $region30: #{double_conv_forward.1} parent=11 // pred_check_branch
        %286 = sbr.rel (%p284) target = $region32
      $region31: #{double_conv_forward.1} parent=11 // pred_region
        _
      $region32: #{double_conv_forward.1} parent=11 // pred_fallthru
        _
      // Predicated region
      $region33: #{double_conv_forward.1} parent=11 // pred_check
        %p287 = pneg %p168
      $region34: #{double_conv_forward.1} parent=11 // pred_check_branch
        %289 = sbr.rel (%p287) target = $region36
      $region35: #{double_conv_forward.1} parent=11 // pred_region
        _
      $region36: #{double_conv_forward.1} parent=11 // pred_fallthru
        _
      // Predicated region
      $region37: #{double_conv_forward.1} parent=11 // pred_check
        %p290 = pneg %p189
      $region38: #{double_conv_forward.1} parent=11 // pred_check_branch
        %292 = sbr.rel (%p290) target = $region40
      $region39: #{double_conv_forward.1} parent=11 // pred_region
        _
      $region40: #{double_conv_forward.1} parent=11 // pred_fallthru
        _
      // Predicated region
      $region41: #{double_conv_forward.1} parent=11 // pred_check
        %p293 = pneg %p210
      $region42: #{double_conv_forward.1} parent=11 // pred_check_branch
        %295 = sbr.rel (%p293) target = $region44
      $region43: #{double_conv_forward.1} parent=11 // pred_region
        _
      $region44: #{double_conv_forward.1} parent=11 // pred_fallthru
        _
      // Predicated region
      $region45: #{double_conv_forward.1} parent=11 // pred_check
        %p296 = pneg %p231
      $region46: #{double_conv_forward.1} parent=11 // pred_check_branch
        %298 = sbr.rel (%p296) target = $region48
      $region47: #{double_conv_forward.1} parent=11 // pred_region
        _
      $region48: #{double_conv_forward.1} parent=11 // pred_fallthru
        _
    $region12: #{double_conv_forward.1} parent=5 // pred_fallthru
      _
    %p299 = scmp.lt.s32.totalorder %s16, 2
    // Predicated region
    $region49: #{double_conv_forward.1} parent=5 // pred_check
      %p300 = pneg %p299
    $region50: #{double_conv_forward.1} parent=5 // pred_check_branch
      %302 = sbr.rel (%p300) target = $region52
    $region51: #{double_conv_forward.1} parent=5 // pred_region
      // Predicated region
      $region53: #{double_conv_forward.1} parent=51 // pred_check
        %p303 = pneg %p36
      $region54: #{double_conv_forward.1} parent=51 // pred_check_branch
        %305 = sbr.rel (%p303) target = $region56
      $region55: #{double_conv_forward.1} parent=51 // pred_region
        %p306 = scmp.lt.s32.totalorder %s16, 1
        %s307 = scalar_select %p306, %s16, 1
        %s308 = smul.addr %s307, 3
        %s309 = smul.addr %s308, 8
        %s310 = scalar_lea.vmem %s0, %s309
      $region56: #{double_conv_forward.1} parent=51 // pred_fallthru
        _
    $region52: #{double_conv_forward.1} parent=5 // pred_fallthru
      _
    %p311 = scmp.le.s32.totalorder 1, %s16
    %p312 = scmp.lt.s32.totalorder %s16, 3
    %p313 = pnand %p311, %p312
    %p314 = pneg %p313
    // Predicated region
    $region57: #{double_conv_forward.1} parent=5 // pred_check
      _
    $region58: #{double_conv_forward.1} parent=5 // pred_check_branch
      %316 = sbr.rel (%p313) target = $region60
    $region59: #{double_conv_forward.1} parent=5 // pred_region
      %s317 = ssub.s32 %s16, 1
      %p318 = scmp.lt.s32.totalorder %s21, 1
      %s319 = scalar_select %p318, %s21, 1
      %s320 = smul.addr %s319, 3
      %s321 = smul.addr %s320, 8
      %s322 = scalar_lea.vmem %s0, %s321
      %p323 = pneg %p42
      %p324 = pneg %p39
      %p325 = pneg %p63
      %p326 = pneg %p60
      %p327 = pneg %p84
      %p328 = pneg %p81
      %p329 = pneg %p105
      %p330 = pneg %p102
      %p331 = pneg %p126
      %p332 = pneg %p123
      %p333 = pneg %p147
      %p334 = pneg %p144
      %p335 = pneg %p168
      %p336 = pneg %p165
      %p337 = pneg %p189
      %p338 = pneg %p186
      %p339 = pneg %p210
      %p340 = pneg %p207
      %p341 = pneg %p231
      %p342 = pneg %p228
      %p343 = pneg %p257
      %p344 = pneg %p254
      %p345 = scmp.lt.s32.totalorder %s21, 1
      %s346 = scalar_select %p345, %s21, 1
      %s347 = smul.addr %s346, 3
      %s348 = smul.addr %s347, 8
      %s349 = scalar_lea.vmem %s10, %s348
      %p350 = scmp.lt.s32.totalorder %s21, 1
      %s351 = scalar_select %p350, %s21, 1
      %s352 = smul.addr %s351, 3
      %s353 = smul.addr %s352, 8
      %s354 = scalar_lea.vmem %s0, %s353
      %p355 = scmp.lt.s32.totalorder %s21, 1
      %s356 = scalar_select %p355, %s21, 1
      %s357 = smul.addr %s356, 3
      %s358 = smul.addr %s357, 8
      %s359 = scalar_lea.vmem %s10, %s358
      %v360 = vld [vmem:[%s354] sm:$0xff]
      %v361 = vld [vmem:[%s354 + $0x8] sm:$0xff]
      %v362 = vld [vmem:[%s354 + $0x10] sm:$0xff]
      %v363 = vld [vmem:[%s1] sm:$0x7]
      %365 = vrot.lane.b32.xlu0 %v362, 19
      %v366 = vpop.permute.xlu0 %365
      %370 = vrot.lane.b32.xlu0 %v360, 19
      %v371 = vpop.permute.xlu0 %370
      %372 = vrot.lane.b32.xlu0 %v361, 19
      %v373 = vpop.permute.xlu0 %372
      %vm374 = vcmask 154624
      %v375 = vsel %vm374, %v371, %v373
      %v376 = vsel %vm374, %v373, %v366
      %v380 = vsel %vm374, %v366, %v371
      %381 = vrot.lane.b32.xlu0 %v362, 18
      %v382 = vpop.permute.xlu0 %381
      %384 = vrot.lane.b32.xlu0 %v360, 18
      %v385 = vpop.permute.xlu0 %384
      %386 = vrot.lane.b32.xlu0 %v361, 18
      %v387 = vpop.permute.xlu0 %386
      %vm388 = vcmask 146432
      %v389 = vsel %vm388, %v385, %v387
      %v390 = vsel %vm388, %v387, %v382
      %v394 = vsel %vm388, %v382, %v385
      %395 = vrot.lane.b32.xlu0 %v362, 17
      %v396 = vpop.permute.xlu0 %395
      %398 = vrot.lane.b32.xlu0 %v360, 17
      %v399 = vpop.permute.xlu0 %398
      %400 = vrot.lane.b32.xlu0 %v361, 17
      %v401 = vpop.permute.xlu0 %400
      %vm402 = vcmask 138240
      %v403 = vsel %vm402, %v399, %v401
      %v404 = vsel %vm402, %v401, %v396
      %v408 = vsel %vm402, %v396, %v399
      %409 = vrot.lane.b32.xlu0 %v362, 1
      %v410 = vpop.permute.xlu0 %409
      %412 = vrot.lane.b32.xlu0 %v360, 1
      %v413 = vpop.permute.xlu0 %412
      %414 = vrot.lane.b32.xlu0 %v361, 1
      %v415 = vpop.permute.xlu0 %414
      %vm416 = vcmask 7168
      %v417 = vsel %vm416, %v413, %v415
      %v418 = vsel %vm416, %v415, %v410
      %v422 = vsel %vm416, %v410, %v413
      %423 = vrot.lane.b32.xlu0 %v360, 127
      %v424 = vpop.permute.xlu0 %423
      %425 = vrot.lane.b32.xlu0 %v361, 127
      %v426 = vpop.permute.xlu0 %425
      %427 = vrot.lane.b32.xlu0 %v362, 127
      %v428 = vpop.permute.xlu0 %427
      %vm429 = vcmask 1039360
      %v430 = vsel %vm429, %v424, %v426
      %v431 = vsel %vm429, %v426, %v428
      %v436 = vsel %vm429, %v428, %v424
      %437 = vrot.lane.b32.xlu0 %v360, 111
      %v438 = vpop.permute.xlu0 %437
      %439 = vrot.lane.b32.xlu0 %v361, 111
      %v440 = vpop.permute.xlu0 %439
      %441 = vrot.lane.b32.xlu0 %v362, 111
      %v442 = vpop.permute.xlu0 %441
      %vm443 = vcmask 908288
      %v444 = vsel %vm443, %v438, %v440
      %v445 = vsel %vm443, %v440, %v442
      %v450 = vsel %vm443, %v442, %v438
      %451 = vrot.lane.b32.xlu0 %v360, 110
      %v452 = vpop.permute.xlu0 %451
      %453 = vrot.lane.b32.xlu0 %v361, 110
      %v454 = vpop.permute.xlu0 %453
      %455 = vrot.lane.b32.xlu0 %v362, 110
      %v456 = vpop.permute.xlu0 %455
      %vm457 = vcmask 900096
      %v458 = vsel %vm457, %v452, %v454
      %v459 = vsel %vm457, %v454, %v456
      %v464 = vsel %vm457, %v456, %v452
      %465 = vrot.lane.b32.xlu0 %v360, 109
      %v466 = vpop.permute.xlu0 %465
      %467 = vrot.lane.b32.xlu0 %v361, 109
      %v468 = vpop.permute.xlu0 %467
      %469 = vrot.lane.b32.xlu0 %v362, 109
      %v470 = vpop.permute.xlu0 %469
      %vm471 = vcmask 891904
      %v472 = vsel %vm471, %v466, %v468
      %v473 = vsel %vm471, %v468, %v470
      %v478 = vsel %vm471, %v470, %v466
      %v479 = vld [vmem:[%s2] sm:$0xff]
      %v480 = vld [vmem:[%s3] sm:$0xff]
      %482 = vset.pattern.permute.xlu0 0
      %483 = vperm.xlu0 %482, %v480
      %v484 = vpop.permute.xlu0 %483
      %vm486 = vcmask 588800
      %v488 = vsel %vm486, %v479, 0
      %490 = vmatpush.msra.mxu0 0.0
      %491 = vmatpush.msra.mxu0 0.0
      %492 = vmatpush.msra.mxu0 0.0
      %493 = vmatpush.msra.mxu0 0.0
      %494 = vmatpush.msra.mxu0 0.0
      %495 = vmatpush.msra.mxu0 0.0
      %496 = vmatpush.msra.mxu0 0.0
      %497 = vmatpush.msra.mxu0 %v472
      %498 = vmatpush.msra.mxu0 %v458
      %499 = vmatpush.msra.mxu0 %v444
      %500 = vmatpush.msra.mxu0 %v430
      %501 = vmatpush.msra.mxu0 %v360
      %502 = vmatpush.msra.mxu0 %v422
      %503 = vmatpush.msra.mxu0 %v408
      %504 = vmatpush.msra.mxu0 %v394
      %505 = vmatpush.msra.mxu0 %v380
      %506 = vmatmul.f32.gmra.mxu0 %v488
      %v507 = vpop.f32.mrf.mxu0
      %v508 = vadd.f32 %v484, %v507
      %509 = vdwg.mxu0
      %510 = vmatpush.msra.mxu0 0.0
      %511 = vmatpush.msra.mxu0 0.0
      %512 = vmatpush.msra.mxu0 0.0
      %513 = vmatpush.msra.mxu0 0.0
      %514 = vmatpush.msra.mxu0 0.0
      %515 = vmatpush.msra.mxu0 0.0
      %516 = vmatpush.msra.mxu0 0.0
      %517 = vmatpush.msra.mxu0 %v473
      %518 = vmatpush.msra.mxu0 %v459
      %519 = vmatpush.msra.mxu0 %v445
      %520 = vmatpush.msra.mxu0 %v431
      %521 = vmatpush.msra.mxu0 %v361
      %522 = vmatpush.msra.mxu0 %v417
      %523 = vmatpush.msra.mxu0 %v403
      %524 = vmatpush.msra.mxu0 %v389
      %525 = vmatpush.msra.mxu0 %v375
      %526 = vmatmul.f32.gmra.mxu0 %v488
      %v527 = vpop.f32.mrf.mxu0
      %v528 = vadd.f32 %v484, %v527
      %529 = vdwg.mxu0
      %530 = vmatpush.msra.mxu0 0.0
      %531 = vmatpush.msra.mxu0 0.0
      %532 = vmatpush.msra.mxu0 0.0
      %533 = vmatpush.msra.mxu0 0.0
      %534 = vmatpush.msra.mxu0 0.0
      %535 = vmatpush.msra.mxu0 0.0
      %536 = vmatpush.msra.mxu0 0.0
      %537 = vmatpush.msra.mxu0 %v478
      %538 = vmatpush.msra.mxu0 %v464
      %539 = vmatpush.msra.mxu0 %v450
      %540 = vmatpush.msra.mxu0 %v436
      %541 = vmatpush.msra.mxu0 %v362
      %542 = vmatpush.msra.mxu0 %v418
      %543 = vmatpush.msra.mxu0 %v404
      %544 = vmatpush.msra.mxu0 %v390
      %545 = vmatpush.msra.mxu0 %v376
      %546 = vmatmul.f32.gmra.mxu0 %v488
      %v547 = vpop.f32.mrf.mxu0
      %v548 = vadd.f32 %v484, %v547
      %549 = vdwg.mxu0
      %v551 = vperm.slane %v363, 0
      %v552 = vperm.slane %v363, 1
      %v553 = vperm.slane %v363, 2
      %v557 = vmul.f32 %v508, %v551
      %v558 = vmul.f32 %v528, %v552
      %v559 = vmul.f32 %v548, %v553
      %v560 = vadd.f32 %v557, %v558
      %v561 = vadd.f32 %v560, %v559
      %562 = vadd.xlane.f32.xlu0 %v561
      %v563 = vpop.xlane.xlu0 %562
      %v564 = vrot.slane %v563, 4
      %v565 = vadd.f32 %v563, %v564
      %v566 = vrot.slane %v565, 2
      %v567 = vadd.f32 %v565, %v566
      %v568 = vrot.slane %v567, 1
      %v569 = vadd.f32 %v567, %v568
      %s570 = vtos %v569
      %v571 = vmul.f32 %v557, %v508
      %v572 = vmul.f32 %v558, %v528
      %v573 = vmul.f32 %v559, %v548
      %v574 = vadd.f32 %v571, %v572
      %v575 = vadd.f32 %v574, %v573
      %576 = vadd.xlane.f32.xlu0 %v575
      %v577 = vpop.xlane.xlu0 %576
      %v578 = vrot.slane %v577, 4
      %v579 = vadd.f32 %v577, %v578
      %v580 = vrot.slane %v579, 2
      %v581 = vadd.f32 %v579, %v580
      %v582 = vrot.slane %v581, 1
      %v583 = vadd.f32 %v581, %v582
      %s584 = vtos %v583
      %s585 = smul.f32 %s570, 0.00048828125
      %s586 = smul.f32 %s584, 0.00048828125
      %s587 = smul.f32 %s585, %s585
      %s588 = ssub.f32 %s586, %s587
      %v589 = vld [vmem:[%s4] sm:$0xff]
      %s590 = sadd.f32 %s588, 1e-05
      %v591 = vstv %s590
      %v592 = vrsqrt.pop %v591
      %v593 = vmul.f32 %v592, %v591
      %v594 = vmul.f32 %v593, %v592
      %v595 = vmul.f32 0.5, %v594
      %v596 = vsub.f32 1.5, %v595
      %v597 = vmul.f32 %v592, %v596
      %vm598 = vweird.f32 %v591
      %vm599 = vweird.f32 %v592
      %vm600 = vmor %vm598, %vm599
      %v601 = vsel %vm600, %v592, %v597
      %s602 = vtos %v601
      %v603 = vstv %s602
      %v604 = vmul.f32 %v589, %v603
      %v605 = vld [vmem:[%s5] sm:$0xff]
      %v606 = vstv %s585
      %v607 = vmul.f32 %v606, %v604
      %v608 = vsub.f32 %v605, %v607
      %610 = vset.pattern.permute.xlu0 0
      %611 = vperm.xlu0 %610, %v604
      %v612 = vpop.permute.xlu0 %611
      %v614 = vmul.f32 %v508, %v612
      %v615 = vmul.f32 %v528, %v612
      %v616 = vmul.f32 %v548, %v612
      %618 = vset.pattern.permute.xlu0 0
      %619 = vperm.xlu0 %618, %v608
      %v620 = vpop.permute.xlu0 %619
      %v622 = vadd.f32 %v614, %v620
      %v623 = vadd.f32 %v615, %v620
      %v624 = vadd.f32 %v616, %v620
      %v625 = vmul.f32 %v622, 0.5
      %v626 = vmul.f32 %v623, 0.5
      %v627 = vmul.f32 %v624, 0.5
      %v628 = vmul.f32 %v622, 0.70710677
      %v629 = vmul.f32 %v623, 0.70710677
      %v630 = vmul.f32 %v624, 0.70710677
      %vm631 = vcmp.ge.f32.partialorder %v628, 0.0
      %vm632 = vcmp.ge.f32.partialorder %v629, 0.0
      %vm633 = vcmp.ge.f32.partialorder %v630, 0.0
      %v634 = vsel %vm631, 1.0, -1.0
      %v635 = vsel %vm632, 1.0, -1.0
      %v636 = vsel %vm633, 1.0, -1.0
      %v637 = vand.u32 2147483647, %v628
      %v638 = vand.u32 2147483647, %v629
      %v639 = vand.u32 2147483647, %v630
      %v640 = vmul.f32 %v637, 0.3275911
      %v641 = vmul.f32 %v638, 0.3275911
      %v642 = vmul.f32 %v639, 0.3275911
      %v643 = vadd.f32 %v640, 1.0
      %v644 = vadd.f32 %v641, 1.0
      %v645 = vadd.f32 %v642, 1.0
      %v646 = vrcp.pop %v643
      %v647 = vmul.f32 %v643, %v646
      %v648 = vsub.f32 1.0, %v647
      %v649 = vmul.f32 %v646, %v648
      %v650 = vadd.f32 %v646, %v649
      %vm651 = vweird.f32 %v643
      %vm652 = vweird.f32 %v646
      %vm653 = vmor %vm651, %vm652
      %v654 = vsel %vm653, %v646, %v650
      %v655 = vand.u32 2147483647, %v643
      %vm656 = vcmp.eq.f32.partialorder %v655, 8.507059e+37
      %v657 = vand.u32 %v643, 2147483648
      %v658 = vor.u32 1.1754944e-38, %v657
      %v659 = vsel %vm656, %v658, %v654
      %v660 = vmul.f32 1.0, %v659
      %v661 = vrcp.pop %v644
      %v662 = vmul.f32 %v644, %v661
      %v663 = vsub.f32 1.0, %v662
      %v664 = vmul.f32 %v661, %v663
      %v665 = vadd.f32 %v661, %v664
      %vm666 = vweird.f32 %v644
      %vm667 = vweird.f32 %v661
      %vm668 = vmor %vm666, %vm667
      %v669 = vsel %vm668, %v661, %v665
      %v670 = vand.u32 2147483647, %v644
      %vm671 = vcmp.eq.f32.partialorder %v670, 8.507059e+37
      %v672 = vand.u32 %v644, 2147483648
      %v673 = vor.u32 1.1754944e-38, %v672
      %v674 = vsel %vm671, %v673, %v669
      %v675 = vmul.f32 1.0, %v674
      %v676 = vrcp.pop %v645
      %v677 = vmul.f32 %v645, %v676
      %v678 = vsub.f32 1.0, %v677
      %v679 = vmul.f32 %v676, %v678
      %v680 = vadd.f32 %v676, %v679
      %vm681 = vweird.f32 %v645
      %vm682 = vweird.f32 %v676
      %vm683 = vmor %vm681, %vm682
      %v684 = vsel %vm683, %v676, %v680
      %v685 = vand.u32 2147483647, %v645
      %vm686 = vcmp.eq.f32.partialorder %v685, 8.507059e+37
      %v687 = vand.u32 %v645, 2147483648
      %v688 = vor.u32 1.1754944e-38, %v687
      %v689 = vsel %vm686, %v688, %v684
      %v690 = vmul.f32 1.0, %v689
      %v691 = vmul.f32 %v660, 1.0614054
      %v692 = vmul.f32 %v675, 1.0614054
      %v693 = vmul.f32 %v690, 1.0614054
      %v694 = vadd.f32 %v691, -1.4531521
      %v695 = vadd.f32 %v692, -1.4531521
      %v696 = vadd.f32 %v693, -1.4531521
      %v697 = vmul.f32 %v694, %v660
      %v698 = vmul.f32 %v695, %v675
      %v699 = vmul.f32 %v696, %v690
      %v700 = vadd.f32 %v697, 1.4214138
      %v701 = vadd.f32 %v698, 1.4214138
      %v702 = vadd.f32 %v699, 1.4214138
      %v703 = vmul.f32 %v700, %v660
      %v704 = vmul.f32 %v701, %v675
      %v705 = vmul.f32 %v702, %v690
      %v706 = vadd.f32 %v703, -0.28449672
      %v707 = vadd.f32 %v704, -0.28449672
      %v708 = vadd.f32 %v705, -0.28449672
      %v709 = vmul.f32 %v706, %v660
      %v710 = vmul.f32 %v707, %v675
      %v711 = vmul.f32 %v708, %v690
      %v712 = vadd.f32 %v709, 0.2548296
      %v713 = vadd.f32 %v710, 0.2548296
      %v714 = vadd.f32 %v711, 0.2548296
      %v715 = vmul.f32 %v712, %v660
      %v716 = vmul.f32 %v713, %v675
      %v717 = vmul.f32 %v714, %v690
      %v718 = vsub.f32 0.0, %v637
      %v719 = vsub.f32 0.0, %v638
      %v720 = vsub.f32 0.0, %v639
      %v721 = vmul.f32 %v718, %v637
      %v722 = vmul.f32 %v719, %v638
      %v723 = vmul.f32 %v720, %v639
      %v724 = vmul.f32 %v721, 1.442695
      %v725 = vpow.pop %v724
      %v726 = vmul.f32 %v722, 1.442695
      %v727 = vpow.pop %v726
      %v728 = vmul.f32 %v723, 1.442695
      %v729 = vpow.pop %v728
      %v730 = vmul.f32 %v715, %v725
      %v731 = vmul.f32 %v716, %v727
      %v732 = vmul.f32 %v717, %v729
      %v733 = vsub.f32 1.0, %v730
      %v734 = vsub.f32 1.0, %v731
      %v735 = vsub.f32 1.0, %v732
      %v736 = vmul.f32 %v634, %v733
      %v737 = vmul.f32 %v635, %v734
      %v738 = vmul.f32 %v636, %v735
      %v739 = vadd.f32 %v736, 1.0
      %v740 = vadd.f32 %v737, 1.0
      %v741 = vadd.f32 %v738, 1.0
      %v742 = vmul.f32 %v625, %v739
      %v743 = vmul.f32 %v626, %v740
      %v744 = vmul.f32 %v627, %v741
      %v745 = vmul.f32 %v742, %v551
      %v746 = vmul.f32 %v743, %v552
      %v747 = vmul.f32 %v744, %v553
      %749 = vrot.lane.b32.xlu0 %v747, 19
      %v750 = vpop.permute.xlu0 %749
      %754 = vrot.lane.b32.xlu0 %v745, 19
      %v755 = vpop.permute.xlu0 %754
      %756 = vrot.lane.b32.xlu0 %v746, 19
      %v757 = vpop.permute.xlu0 %756
      %v758 = vsel %vm374, %v755, %v757
      %v759 = vsel %vm374, %v757, %v750
      %v763 = vsel %vm374, %v750, %v755
      %764 = vrot.lane.b32.xlu0 %v747, 18
      %v765 = vpop.permute.xlu0 %764
      %767 = vrot.lane.b32.xlu0 %v745, 18
      %v768 = vpop.permute.xlu0 %767
      %769 = vrot.lane.b32.xlu0 %v746, 18
      %v770 = vpop.permute.xlu0 %769
      %v771 = vsel %vm388, %v768, %v770
      %v772 = vsel %vm388, %v770, %v765
      %v776 = vsel %vm388, %v765, %v768
      %777 = vrot.lane.b32.xlu0 %v747, 17
      %v778 = vpop.permute.xlu0 %777
      %780 = vrot.lane.b32.xlu0 %v745, 17
      %v781 = vpop.permute.xlu0 %780
      %782 = vrot.lane.b32.xlu0 %v746, 17
      %v783 = vpop.permute.xlu0 %782
      %v784 = vsel %vm402, %v781, %v783
      %v785 = vsel %vm402, %v783, %v778
      %v789 = vsel %vm402, %v778, %v781
      %790 = vrot.lane.b32.xlu0 %v747, 1
      %v791 = vpop.permute.xlu0 %790
      %793 = vrot.lane.b32.xlu0 %v745, 1
      %v794 = vpop.permute.xlu0 %793
      %795 = vrot.lane.b32.xlu0 %v746, 1
      %v796 = vpop.permute.xlu0 %795
      %v797 = vsel %vm416, %v794, %v796
      %v798 = vsel %vm416, %v796, %v791
      %v802 = vsel %vm416, %v791, %v794
      %803 = vrot.lane.b32.xlu0 %v745, 127
      %v804 = vpop.permute.xlu0 %803
      %805 = vrot.lane.b32.xlu0 %v746, 127
      %v806 = vpop.permute.xlu0 %805
      %807 = vrot.lane.b32.xlu0 %v747, 127
      %v808 = vpop.permute.xlu0 %807
      %v809 = vsel %vm429, %v804, %v806
      %v810 = vsel %vm429, %v806, %v808
      %v815 = vsel %vm429, %v808, %v804
      %816 = vrot.lane.b32.xlu0 %v745, 111
      %v817 = vpop.permute.xlu0 %816
      %818 = vrot.lane.b32.xlu0 %v746, 111
      %v819 = vpop.permute.xlu0 %818
      %820 = vrot.lane.b32.xlu0 %v747, 111
      %v821 = vpop.permute.xlu0 %820
      %v822 = vsel %vm443, %v817, %v819
      %v823 = vsel %vm443, %v819, %v821
      %v828 = vsel %vm443, %v821, %v817
      %829 = vrot.lane.b32.xlu0 %v745, 110
      %v830 = vpop.permute.xlu0 %829
      %831 = vrot.lane.b32.xlu0 %v746, 110
      %v832 = vpop.permute.xlu0 %831
      %833 = vrot.lane.b32.xlu0 %v747, 110
      %v834 = vpop.permute.xlu0 %833
      %v835 = vsel %vm457, %v830, %v832
      %v836 = vsel %vm457, %v832, %v834
      %v841 = vsel %vm457, %v834, %v830
      %842 = vrot.lane.b32.xlu0 %v745, 109
      %v843 = vpop.permute.xlu0 %842
      %844 = vrot.lane.b32.xlu0 %v746, 109
      %v845 = vpop.permute.xlu0 %844
      %846 = vrot.lane.b32.xlu0 %v747, 109
      %v847 = vpop.permute.xlu0 %846
      %v848 = vsel %vm471, %v843, %v845
      %v849 = vsel %vm471, %v845, %v847
      %v854 = vsel %vm471, %v847, %v843
      %v855 = vld [vmem:[%s6] sm:$0xff]
      %v856 = vld [vmem:[%s7] sm:$0xff]
      %858 = vset.pattern.permute.xlu0 0
      %859 = vperm.xlu0 %858, %v856
      %v860 = vpop.permute.xlu0 %859
      %v863 = vsel %vm486, %v855, 0
      %865 = vmatpush.msra.mxu0 0.0
      %866 = vmatpush.msra.mxu0 0.0
      %867 = vmatpush.msra.mxu0 0.0
      %868 = vmatpush.msra.mxu0 0.0
      %869 = vmatpush.msra.mxu0 0.0
      %870 = vmatpush.msra.mxu0 0.0
      %871 = vmatpush.msra.mxu0 0.0
      %872 = vmatpush.msra.mxu0 %v848
      %873 = vmatpush.msra.mxu0 %v835
      %874 = vmatpush.msra.mxu0 %v822
      %875 = vmatpush.msra.mxu0 %v809
      %876 = vmatpush.msra.mxu0 %v745
      %877 = vmatpush.msra.mxu0 %v802
      %878 = vmatpush.msra.mxu0 %v789
      %879 = vmatpush.msra.mxu0 %v776
      %880 = vmatpush.msra.mxu0 %v763
      %881 = vmatmul.f32.gmra.mxu0 %v863
      %v882 = vpop.f32.mrf.mxu0
      %v883 = vadd.f32 %v860, %v882
      %884 = vdwg.mxu0
      %885 = vmatpush.msra.mxu0 0.0
      %886 = vmatpush.msra.mxu0 0.0
      %887 = vmatpush.msra.mxu0 0.0
      %888 = vmatpush.msra.mxu0 0.0
      %889 = vmatpush.msra.mxu0 0.0
      %890 = vmatpush.msra.mxu0 0.0
      %891 = vmatpush.msra.mxu0 0.0
      %892 = vmatpush.msra.mxu0 %v849
      %893 = vmatpush.msra.mxu0 %v836
      %894 = vmatpush.msra.mxu0 %v823
      %895 = vmatpush.msra.mxu0 %v810
      %896 = vmatpush.msra.mxu0 %v746
      %897 = vmatpush.msra.mxu0 %v797
      %898 = vmatpush.msra.mxu0 %v784
      %899 = vmatpush.msra.mxu0 %v771
      %900 = vmatpush.msra.mxu0 %v758
      %901 = vmatmul.f32.gmra.mxu0 %v863
      %v902 = vpop.f32.mrf.mxu0
      %v903 = vadd.f32 %v860, %v902
      %904 = vdwg.mxu0
      %905 = vmatpush.msra.mxu0 0.0
      %906 = vmatpush.msra.mxu0 0.0
      %907 = vmatpush.msra.mxu0 0.0
      %908 = vmatpush.msra.mxu0 0.0
      %909 = vmatpush.msra.mxu0 0.0
      %910 = vmatpush.msra.mxu0 0.0
      %911 = vmatpush.msra.mxu0 0.0
      %912 = vmatpush.msra.mxu0 %v854
      %913 = vmatpush.msra.mxu0 %v841
      %914 = vmatpush.msra.mxu0 %v828
      %915 = vmatpush.msra.mxu0 %v815
      %916 = vmatpush.msra.mxu0 %v747
      %917 = vmatpush.msra.mxu0 %v798
      %918 = vmatpush.msra.mxu0 %v785
      %919 = vmatpush.msra.mxu0 %v772
      %920 = vmatpush.msra.mxu0 %v759
      %921 = vmatmul.f32.gmra.mxu0 %v863
      %v922 = vpop.f32.mrf.mxu0
      %v923 = vadd.f32 %v860, %v922
      %924 = vdwg.mxu0
      %v925 = vmul.f32 %v883, %v551
      %v926 = vmul.f32 %v903, %v552
      %v927 = vmul.f32 %v923, %v553
      %v928 = vadd.f32 %v925, %v926
      %v929 = vadd.f32 %v928, %v927
      %930 = vadd.xlane.f32.xlu0 %v929
      %v931 = vpop.xlane.xlu0 %930
      %v932 = vrot.slane %v931, 4
      %v933 = vadd.f32 %v931, %v932
      %v934 = vrot.slane %v933, 2
      %v935 = vadd.f32 %v933, %v934
      %v936 = vrot.slane %v935, 1
      %v937 = vadd.f32 %v935, %v936
      %s938 = vtos %v937
      %v939 = vmul.f32 %v925, %v883
      %v940 = vmul.f32 %v926, %v903
      %v941 = vmul.f32 %v927, %v923
      %v942 = vadd.f32 %v939, %v940
      %v943 = vadd.f32 %v942, %v941
      %944 = vadd.xlane.f32.xlu0 %v943
      %v945 = vpop.xlane.xlu0 %944
      %v946 = vrot.slane %v945, 4
      %v947 = vadd.f32 %v945, %v946
      %v948 = vrot.slane %v947, 2
      %v949 = vadd.f32 %v947, %v948
      %v950 = vrot.slane %v949, 1
      %v951 = vadd.f32 %v949, %v950
      %s952 = vtos %v951
      %s953 = smul.f32 %s938, 0.00048828125
      %s954 = smul.f32 %s952, 0.00048828125
      %s955 = smul.f32 %s953, %s953
      %s956 = ssub.f32 %s954, %s955
      %v957 = vld [vmem:[%s8] sm:$0xff]
      %s958 = sadd.f32 %s956, 1e-05
      %v959 = vstv %s958
      %v960 = vrsqrt.pop %v959
      %v961 = vmul.f32 %v960, %v959
      %v962 = vmul.f32 %v961, %v960
      %v963 = vmul.f32 0.5, %v962
      %v964 = vsub.f32 1.5, %v963
      %v965 = vmul.f32 %v960, %v964
      %vm966 = vweird.f32 %v959
      %vm967 = vweird.f32 %v960
      %vm968 = vmor %vm966, %vm967
      %v969 = vsel %vm968, %v960, %v965
      %s970 = vtos %v969
      %v971 = vstv %s970
      %v972 = vmul.f32 %v957, %v971
      %v973 = vld [vmem:[%s9] sm:$0xff]
      %v974 = vstv %s953
      %v975 = vmul.f32 %v974, %v972
      %v976 = vsub.f32 %v973, %v975
      %978 = vset.pattern.permute.xlu0 0
      %979 = vperm.xlu0 %978, %v972
      %v980 = vpop.permute.xlu0 %979
      %v982 = vmul.f32 %v883, %v980
      %v983 = vmul.f32 %v903, %v980
      %v984 = vmul.f32 %v923, %v980
      %986 = vset.pattern.permute.xlu0 0
      %987 = vperm.xlu0 %986, %v976
      %v988 = vpop.permute.xlu0 %987
      %v990 = vadd.f32 %v982, %v988
      %v991 = vadd.f32 %v983, %v988
      %v992 = vadd.f32 %v984, %v988
      %v993 = vmul.f32 %v990, 0.5
      %v994 = vmul.f32 %v991, 0.5
      %v995 = vmul.f32 %v992, 0.5
      %v996 = vmul.f32 %v990, 0.70710677
      %v997 = vmul.f32 %v991, 0.70710677
      %v998 = vmul.f32 %v992, 0.70710677
      %vm999 = vcmp.ge.f32.partialorder %v996, 0.0
      %vm1000 = vcmp.ge.f32.partialorder %v997, 0.0
      %vm1001 = vcmp.ge.f32.partialorder %v998, 0.0
      %v1002 = vsel %vm999, 1.0, -1.0
      %v1003 = vsel %vm1000, 1.0, -1.0
      %v1004 = vsel %vm1001, 1.0, -1.0
      %v1005 = vand.u32 2147483647, %v996
      %v1006 = vand.u32 2147483647, %v997
      %v1007 = vand.u32 2147483647, %v998
      %v1008 = vmul.f32 %v1005, 0.3275911
      %v1009 = vmul.f32 %v1006, 0.3275911
      %v1010 = vmul.f32 %v1007, 0.3275911
      %v1011 = vadd.f32 %v1008, 1.0
      %v1012 = vadd.f32 %v1009, 1.0
      %v1013 = vadd.f32 %v1010, 1.0
      %v1014 = vrcp.pop %v1011
      %v1015 = vmul.f32 %v1011, %v1014
      %v1016 = vsub.f32 1.0, %v1015
      %v1017 = vmul.f32 %v1014, %v1016
      %v1018 = vadd.f32 %v1014, %v1017
      %vm1019 = vweird.f32 %v1011
      %vm1020 = vweird.f32 %v1014
      %vm1021 = vmor %vm1019, %vm1020
      %v1022 = vsel %vm1021, %v1014, %v1018
      %v1023 = vand.u32 2147483647, %v1011
      %vm1024 = vcmp.eq.f32.partialorder %v1023, 8.507059e+37
      %v1025 = vand.u32 %v1011, 2147483648
      %v1026 = vor.u32 1.1754944e-38, %v1025
      %v1027 = vsel %vm1024, %v1026, %v1022
      %v1028 = vmul.f32 1.0, %v1027
      %v1029 = vrcp.pop %v1012
      %v1030 = vmul.f32 %v1012, %v1029
      %v1031 = vsub.f32 1.0, %v1030
      %v1032 = vmul.f32 %v1029, %v1031
      %v1033 = vadd.f32 %v1029, %v1032
      %vm1034 = vweird.f32 %v1012
      %vm1035 = vweird.f32 %v1029
      %vm1036 = vmor %vm1034, %vm1035
      %v1037 = vsel %vm1036, %v1029, %v1033
      %v1038 = vand.u32 2147483647, %v1012
      %vm1039 = vcmp.eq.f32.partialorder %v1038, 8.507059e+37
      %v1040 = vand.u32 %v1012, 2147483648
      %v1041 = vor.u32 1.1754944e-38, %v1040
      %v1042 = vsel %vm1039, %v1041, %v1037
      %v1043 = vmul.f32 1.0, %v1042
      %v1044 = vrcp.pop %v1013
      %v1045 = vmul.f32 %v1013, %v1044
      %v1046 = vsub.f32 1.0, %v1045
      %v1047 = vmul.f32 %v1044, %v1046
      %v1048 = vadd.f32 %v1044, %v1047
      %vm1049 = vweird.f32 %v1013
      %vm1050 = vweird.f32 %v1044
      %vm1051 = vmor %vm1049, %vm1050
      %v1052 = vsel %vm1051, %v1044, %v1048
      %v1053 = vand.u32 2147483647, %v1013
      %vm1054 = vcmp.eq.f32.partialorder %v1053, 8.507059e+37
      %v1055 = vand.u32 %v1013, 2147483648
      %v1056 = vor.u32 1.1754944e-38, %v1055
      %v1057 = vsel %vm1054, %v1056, %v1052
      %v1058 = vmul.f32 1.0, %v1057
      %v1059 = vmul.f32 %v1028, 1.0614054
      %v1060 = vmul.f32 %v1043, 1.0614054
      %v1061 = vmul.f32 %v1058, 1.0614054
      %v1062 = vadd.f32 %v1059, -1.4531521
      %v1063 = vadd.f32 %v1060, -1.4531521
      %v1064 = vadd.f32 %v1061, -1.4531521
      %v1065 = vmul.f32 %v1062, %v1028
      %v1066 = vmul.f32 %v1063, %v1043
      %v1067 = vmul.f32 %v1064, %v1058
      %v1068 = vadd.f32 %v1065, 1.4214138
      %v1069 = vadd.f32 %v1066, 1.4214138
      %v1070 = vadd.f32 %v1067, 1.4214138
      %v1071 = vmul.f32 %v1068, %v1028
      %v1072 = vmul.f32 %v1069, %v1043
      %v1073 = vmul.f32 %v1070, %v1058
      %v1074 = vadd.f32 %v1071, -0.28449672
      %v1075 = vadd.f32 %v1072, -0.28449672
      %v1076 = vadd.f32 %v1073, -0.28449672
      %v1077 = vmul.f32 %v1074, %v1028
      %v1078 = vmul.f32 %v1075, %v1043
      %v1079 = vmul.f32 %v1076, %v1058
      %v1080 = vadd.f32 %v1077, 0.2548296
      %v1081 = vadd.f32 %v1078, 0.2548296
      %v1082 = vadd.f32 %v1079, 0.2548296
      %v1083 = vmul.f32 %v1080, %v1028
      %v1084 = vmul.f32 %v1081, %v1043
      %v1085 = vmul.f32 %v1082, %v1058
      %v1086 = vsub.f32 0.0, %v1005
      %v1087 = vsub.f32 0.0, %v1006
      %v1088 = vsub.f32 0.0, %v1007
      %v1089 = vmul.f32 %v1086, %v1005
      %v1090 = vmul.f32 %v1087, %v1006
      %v1091 = vmul.f32 %v1088, %v1007
      %v1092 = vmul.f32 %v1089, 1.442695
      %v1093 = vpow.pop %v1092
      %v1094 = vmul.f32 %v1090, 1.442695
      %v1095 = vpow.pop %v1094
      %v1096 = vmul.f32 %v1091, 1.442695
      %v1097 = vpow.pop %v1096
      %v1098 = vmul.f32 %v1083, %v1093
      %v1099 = vmul.f32 %v1084, %v1095
      %v1100 = vmul.f32 %v1085, %v1097
      %v1101 = vsub.f32 1.0, %v1098
      %v1102 = vsub.f32 1.0, %v1099
      %v1103 = vsub.f32 1.0, %v1100
      %v1104 = vmul.f32 %v1002, %v1101
      %v1105 = vmul.f32 %v1003, %v1102
      %v1106 = vmul.f32 %v1004, %v1103
      %v1107 = vadd.f32 %v1104, 1.0
      %v1108 = vadd.f32 %v1105, 1.0
      %v1109 = vadd.f32 %v1106, 1.0
      %v1110 = vmul.f32 %v993, %v1107
      %v1111 = vmul.f32 %v994, %v1108
      %v1112 = vmul.f32 %v995, %v1109
      %v1113 = vadd.f32 %v1110, %v745
      %v1114 = vadd.f32 %v1111, %v746
      %v1115 = vadd.f32 %v1112, %v747
      %v1116 = vmul.f32 %v1113, 0.7072136
      %v1117 = vmul.f32 %v1114, 0.7072136
      %v1118 = vmul.f32 %v1115, 0.7072136
      %1119 = vst [vmem:[%s359] sm:$0xff] %v1116
      %1120 = vst [vmem:[%s359 + $0x8] sm:$0xff] %v1117
      %1121 = vst [vmem:[%s359 + $0x10] sm:$0xff] %v1118
      %p1122 = scmp.lt.s32.totalorder %s21, 1
      %s1123 = scalar_select %p1122, %s21, 1
      %s1124 = smul.addr %s1123, 3
      %s1125 = smul.addr %s1124, 8
      %s1126 = scalar_lea.vmem %s10, %s1125
      // Predicated region
      $region61: #{double_conv_forward.1} parent=59 // pred_check
        %p1127 = pneg %p254
      $region62: #{double_conv_forward.1} parent=59 // pred_check_branch
        %1129 = sbr.rel (%p1127) target = $region64
      $region63: #{double_conv_forward.1} parent=59 // pred_region
        _
      $region64: #{double_conv_forward.1} parent=59 // pred_fallthru
        _
    $region60: #{double_conv_forward.1} parent=5 // pred_fallthru
      _
    %p1130 = scmp.le.s32.totalorder 2, %s16
    // Predicated region
    $region65: #{double_conv_forward.1} parent=5 // pred_check
      %p1131 = pneg %p1130
    $region66: #{double_conv_forward.1} parent=5 // pred_check_branch
      %1133 = sbr.rel (%p1131) target = $region68
    $region67: #{double_conv_forward.1} parent=5 // pred_region
      %s1134 = ssub.s32 %s16, 2
      // Predicated region
      $region69: #{double_conv_forward.1} parent=67 // pred_check
        %p1135 = pneg %p260
      $region70: #{double_conv_forward.1} parent=67 // pred_check_branch
        %1137 = sbr.rel (%p1135) target = $region72
      $region71: #{double_conv_forward.1} parent=67 // pred_region
        %p1138 = scmp.lt.s32.totalorder %s22, 1
        %s1139 = scalar_select %p1138, %s22, 1
        %s1140 = smul.addr %s1139, 3
        %s1141 = smul.addr %s1140, 8
        %s1142 = scalar_lea.vmem %s10, %s1141
      $region72: #{double_conv_forward.1} parent=67 // pred_fallthru
        _
    $region68: #{double_conv_forward.1} parent=5 // pred_fallthru
      _
  $region6: #{double_conv_forward.1} parent=0 // loop_footer
    %s20 = sadd.s32 1, %s16
  $region7: #{double_conv_forward.1} parent=0 // loop_footer_branch
    %15 = sbr.rel target = $region3
  $region8: #{double_conv_forward.1} parent=0 // loop_exit
    _

</llo_original>
